<compile_context>
chip_gen: v6e
topology: v6e:2x2x1
jax: 0.10.0
libtpu: 0.0.40
codegen_flags: <defaults>
</compile_context>

<pallas_src>
import functools

import jax
import jax.numpy as jnp
from jax import lax
from jax.experimental import pallas as pl
from jax.experimental.pallas import tpu as pltpu


def _convlstm_kernel(x_ref, h_ref, c_ref, w_ref, b_ref,
                     h_out_ref, c_out_ref, s_ref,
                     *, B, H, W, Cin, Ch, K, BLK):
    """Single-invocation fused ConvLSTM cell.

    x_ref : (B*H, W*Cin)    bf16 input rows, lane-dense
    h_ref : (B*H, W*Ch)     bf16 previous hidden state
    c_ref : (B*H, W*Ch)     f32  previous cell state
    w_ref : (K*BLK, 4*W*Ch) bf16 fused row-Toeplitz conv weight
                            (g-gate columns pre-scaled by 2)
    b_ref : (1, 4*W*Ch)     f32  bias tiled over W, gate-major (g scaled by 2)
    outs  : h_new, c_new    (B*H, W*Ch)
    s_ref : (B*H, K*BLK)    bf16 VMEM staging slab (combined MXU operand)
    """
    P = K // 2
    Lx = W * Cin
    Lh = W * Ch

    # Zero the staging slab once (48 KB -> ~12 vst); this covers both the
    # H-halo rows of the shifted blocks and the pad columns in one shot —
    # finer-grained zeroing would not issue fewer stores at these shapes.
    s_ref[...] = jnp.zeros(s_ref.shape, s_ref.dtype)

    # Stage the combined bf16 operand.  For kernel row kh, the BLK-wide block
    # holds [h | x | pad]; destination rows are shifted by (kh - P) so the
    # matmul's contraction performs the H-direction taps with zero padding.
    # All slices are static; kh/b loops are fully unrolled (K*B*2 = 12 copies).
    for kh in range(K):
        shift = kh - P
        dst_lo, dst_hi = max(0, -shift), min(H, H - shift)
        src_lo, src_hi = dst_lo + shift, dst_hi + shift
        c_h = kh * BLK
        c_x = kh * BLK + Lh
        for b in range(B):
            d0, d1 = b * H + dst_lo, b * H + dst_hi
            s0, s1 = b * H + src_lo, b * H + src_hi
            s_ref[d0:d1, c_h:c_h + Lh] = h_ref[s0:s1, :]
            s_ref[d0:d1, c_x:c_x + Lx] = x_ref[s0:s1, :]

    # One deep-contraction MXU matmul for all gates / taps / batches,
    # bf16 operands with f32 accumulation; bias added in f32.
    acc = jnp.dot(s_ref[...], w_ref[...], preferred_element_type=jnp.float32)
    acc = acc + b_ref[...]

    # Single contiguous EUP tanh stream over the whole (B*H, 4*Lh) gate slab.
    # i/f/o columns hold z -> 0.5*(tanh(z/2)+1) == sigmoid(z);
    # g columns hold 2z (weight/bias pre-scaled) -> tanh(0.5*2z) == tanh(z).
    t = jnp.tanh(0.5 * acc)
    i_g = 0.5 * (t[:, 0 * Lh:1 * Lh] + 1.0)
    f_g = 0.5 * (t[:, 1 * Lh:2 * Lh] + 1.0)
    o_g = 0.5 * (t[:, 2 * Lh:3 * Lh] + 1.0)
    g_g = t[:, 3 * Lh:4 * Lh]

    c_new = f_g * c_ref[...] + i_g * g_g
    h_new = o_g * jnp.tanh(c_new)

    c_out_ref[...] = c_new.astype(c_out_ref.dtype)
    h_out_ref[...] = h_new.astype(h_out_ref.dtype)


def _row_toeplitz(w_part, W, K, P):
    """(K, K, C, 4*Ch) conv weights -> (K, W*C, 4*W*Ch) row-Toeplitz matrices.

    Row index is (j_in, c); output columns are ordered (gate, j_out, ch) so
    each gate occupies one contiguous W*Ch-wide (128-lane) block; zero 'same'
    padding along W is encoded in the band structure.
    """
    _, _, C, Co = w_part.shape
    Ch = Co // 4
    j_in = jnp.arange(W)[:, None]        # (W, 1)
    j_out = jnp.arange(W)[None, :]       # (1, W)
    kw = j_in - j_out + P                # (W_in, W_out)
    valid = (kw >= 0) & (kw < K)
    kw_c = jnp.clip(kw, 0, K - 1)
    t = w_part[:, kw_c, :, :]                              # (K, Win, Wout, C, 4Ch)
    t = jnp.where(valid[None, :, :, None, None], t, 0.0)
    t = t.reshape(K, W, W, C, 4, Ch)
    t = jnp.transpose(t, (0, 1, 3, 4, 2, 5))               # (K, Win, C, gate, Wout, Ch)
    return t.reshape(K, W * C, 4 * W * Ch)


def convlstm_cell(x, h, c, w_hwio, bias):
    """x: (B,H,W,Cin), h/c: (B,H,W,Ch), w_hwio: (K,K,Cin+Ch,4*Ch), bias: (4*Ch,)."""
    B, H, W, Cin = x.shape
    Ch = h.shape[-1]
    K = w_hwio.shape[0]
    P = K // 2
    Lx, Lh = W * Cin, W * Ch
    G = 4 * Lh
    # Per-kh operand block: [h (Lh) | x (Lx) | zero pad] rounded up to 128
    # lanes so every h sub-block starts lane-aligned (Lh=128 here).
    BLK = ((Lh + Lx + 127) // 128) * 128

    # ---- parameter prep (one-off / constant-folded under jit) ----
    wx_t = _row_toeplitz(w_hwio[:, :, :Cin, :], W, K, P)       # (K, Lx, G)
    wh_t = _row_toeplitz(w_hwio[:, :, Cin:, :], W, K, P)       # (K, Lh, G)
    pad = jnp.zeros((K, BLK - Lh - Lx, G), wh_t.dtype)
    # Fold a 2x into the g-gate columns so the kernel runs one tanh(acc/2)
    # over the whole gate slab (exact sigmoid for i/f/o, exact tanh for g).
    gate_scale = jnp.concatenate(
        [jnp.ones((3 * Lh,), jnp.float32), jnp.full((Lh,), 2.0, jnp.float32)])
    wf = jnp.concatenate([wh_t, wx_t, pad], axis=1).reshape(K * BLK, G)
    wf = (wf * gate_scale[None, :]).astype(jnp.bfloat16)
    b_t = jnp.tile(bias.reshape(4, 1, Ch), (1, W, 1)).reshape(1, G)
    b_t = (b_t * gate_scale[None, :]).astype(jnp.float32)

    # Lane-dense activations, cast to bf16 once here (halves input DMA; the
    # kernel stages them straight into the bf16 MXU operand with no re-casts).
    x2 = x.reshape(B * H, Lx).astype(jnp.bfloat16)
    h2 = h.reshape(B * H, Lh).astype(jnp.bfloat16)
    c2 = c.reshape(B * H, Lh).astype(jnp.float32)

    kernel = functools.partial(_convlstm_kernel, B=B, H=H, W=W,
                               Cin=Cin, Ch=Ch, K=K, BLK=BLK)
    h2n, c2n = pl.pallas_call(
        kernel,
        out_shape=(jax.ShapeDtypeStruct((B * H, Lh), x.dtype),
                   jax.ShapeDtypeStruct((B * H, Lh), jnp.float32)),
        scratch_shapes=[pltpu.VMEM((B * H, K * BLK), jnp.bfloat16)],
    )(x2, h2, c2, wf, b_t)
    return h2n.reshape(B, H, W, Ch), c2n.reshape(B, H, W, Ch).astype(c.dtype)


def _reference(x, h, c, w_hwio, bias):
    """Pure-JAX reference (intended module semantics)."""
    K = w_hwio.shape[0]
    P = K // 2
    cat = jnp.concatenate([x, h], axis=-1)
    gates = lax.conv_general_dilated(
        cat, w_hwio, window_strides=(1, 1), padding=[(P, P), (P, P)],
        dimension_numbers=("NHWC", "HWIO", "NHWC")) + bias
    i, f, o, g = jnp.split(gates, 4, axis=-1)
    i, f, o = jax.nn.sigmoid(i), jax.nn.sigmoid(f), jax.nn.sigmoid(o)
    g = jnp.tanh(g)
    c_new = f * c + i * g
    h_new = o * jnp.tanh(c_new)
    return h_new, c_new


if __name__ == "__main__":
    # Small shapes consistent with the module: batch=2, input_channels=4,
    # hidden_channels=8, spatial=16, kernel_size=3  (so W*Ch = 128 lanes).
    B, Hs, Ws = 2, 16, 16
    Cin, Ch, K = 4, 8, 3

    key = jax.random.PRNGKey(0)
    kx, kh, kc, kw, kb = jax.random.split(key, 5)

    x = jax.random.normal(kx, (B, Hs, Ws, Cin), jnp.float32)
    h0 = jax.random.normal(kh, (B, Hs, Ws, Ch), jnp.float32)
    c0 = jax.random.normal(kc, (B, Hs, Ws, Ch), jnp.float32)

    # Conv2d params in HWIO (PyTorch OIHW equivalent would be (4*Ch, Cin+Ch, K, K)).
    fan_in = (Cin + Ch) * K * K
    bound = 1.0 / jnp.sqrt(fan_in)
    w_hwio = jax.random.uniform(kw, (K, K, Cin + Ch, 4 * Ch),
                                jnp.float32, -bound, bound)
    bias = jax.random.uniform(kb, (4 * Ch,), jnp.float32, -bound, bound)

    h_new, c_new = jax.jit(convlstm_cell)(x, h0, c0, w_hwio, bias)
    jax.block_until_ready((h_new, c_new))

    # Tight check: reference with the matmul operands rounded to bf16 exactly
    # as the kernel's MXU path does (f32 accumulation on both sides).
    rt = lambda a: a.astype(jnp.bfloat16).astype(jnp.float32)
    h_ref, c_ref = _reference(rt(x), rt(h0), c0, rt(w_hwio), bias)
    assert jnp.allclose(h_new, h_ref, atol=1e-4, rtol=1e-4), "h mismatch"
    assert jnp.allclose(c_new, c_ref, atol=1e-4, rtol=1e-4), "c mismatch"

    # Loose sanity check against exact-f32 module semantics (bf16 operand noise only).
    h_f32, c_f32 = _reference(x, h0, c0, w_hwio, bias)
    assert jnp.allclose(h_new, h_f32, atol=5e-2, rtol=5e-2), "h drift"
    assert jnp.allclose(c_new, c_f32, atol=5e-2, rtol=5e-2), "c drift"

    print("KERNEL_OK")
</pallas_src>

<mosaic_0001>
module attributes {stable_mosaic.version = 11 : i64} {
  func.func @_convlstm_kernel(%arg0: memref<32x64xbf16, #tpu.memory_space<vmem>>, %arg1: memref<32x128xbf16, #tpu.memory_space<vmem>>, %arg2: memref<32x128xf32, #tpu.memory_space<vmem>>, %arg3: memref<768x512xbf16, #tpu.memory_space<vmem>>, %arg4: memref<1x512xf32, #tpu.memory_space<vmem>>, %arg5: memref<32x128xf32, #tpu.memory_space<vmem>>, %arg6: memref<32x128xf32, #tpu.memory_space<vmem>>, %arg7: memref<32x768xbf16, #tpu.memory_space<vmem>>) attributes {dimension_semantics = [], scalar_prefetch = 0 : i64, scratch_operands = 1 : i64, tpu.core_type = #tpu.core_type<tc>} {
    %cst = arith.constant 0.000000e+00 : bf16
    %0 = vector.broadcast %cst : bf16 to vector<32x768xbf16>
    %c0 = arith.constant 0 : index
    %c0_0 = arith.constant 0 : index
    %1 = vector.load %arg7[%c0, %c0_0] : memref<32x768xbf16, #tpu.memory_space<vmem>>, vector<32x768xbf16>
    tpu.vector_store %arg7[%c0, %c0_0], %0 {strides = array<i32>} : memref<32x768xbf16, #tpu.memory_space<vmem>>, vector<32x768xbf16>,
    %c0_1 = arith.constant 0 : index
    %c0_2 = arith.constant 0 : index
    %2 = vector.load %arg1[%c0_1, %c0_2] : memref<32x128xbf16, #tpu.memory_space<vmem>>, vector<15x128xbf16>
    %c1 = arith.constant 1 : index
    %c0_3 = arith.constant 0 : index
    %3 = vector.load %arg7[%c1, %c0_3] : memref<32x768xbf16, #tpu.memory_space<vmem>>, vector<15x128xbf16>
    tpu.vector_store %arg7[%c1, %c0_3], %2 {strides = array<i32>} : memref<32x768xbf16, #tpu.memory_space<vmem>>, vector<15x128xbf16>,
    %c0_4 = arith.constant 0 : index
    %c0_5 = arith.constant 0 : index
    %4 = vector.load %arg0[%c0_4, %c0_5] : memref<32x64xbf16, #tpu.memory_space<vmem>>, vector<15x64xbf16>
    %c1_6 = arith.constant 1 : index
    %c128 = arith.constant 128 : index
    %5 = vector.load %arg7[%c1_6, %c128] : memref<32x768xbf16, #tpu.memory_space<vmem>>, vector<15x64xbf16>
    tpu.vector_store %arg7[%c1_6, %c128], %4 {strides = array<i32>} : memref<32x768xbf16, #tpu.memory_space<vmem>>, vector<15x64xbf16>,
    %c16 = arith.constant 16 : index
    %c0_7 = arith.constant 0 : index
    %6 = vector.load %arg1[%c16, %c0_7] : memref<32x128xbf16, #tpu.memory_space<vmem>>, vector<15x128xbf16>
    %c17 = arith.constant 17 : index
    %c0_8 = arith.constant 0 : index
    %7 = vector.load %arg7[%c17, %c0_8] : memref<32x768xbf16, #tpu.memory_space<vmem>>, vector<15x128xbf16>
    tpu.vector_store %arg7[%c17, %c0_8], %6 {strides = array<i32>} : memref<32x768xbf16, #tpu.memory_space<vmem>>, vector<15x128xbf16>,
    %c16_9 = arith.constant 16 : index
    %c0_10 = arith.constant 0 : index
    %8 = vector.load %arg0[%c16_9, %c0_10] : memref<32x64xbf16, #tpu.memory_space<vmem>>, vector<15x64xbf16>
    %c17_11 = arith.constant 17 : index
    %c128_12 = arith.constant 128 : index
    %9 = vector.load %arg7[%c17_11, %c128_12] : memref<32x768xbf16, #tpu.memory_space<vmem>>, vector<15x64xbf16>
    tpu.vector_store %arg7[%c17_11, %c128_12], %8 {strides = array<i32>} : memref<32x768xbf16, #tpu.memory_space<vmem>>, vector<15x64xbf16>,
    %c0_13 = arith.constant 0 : index
    %c0_14 = arith.constant 0 : index
    %10 = vector.load %arg1[%c0_13, %c0_14] : memref<32x128xbf16, #tpu.memory_space<vmem>>, vector<16x128xbf16>
    %c0_15 = arith.constant 0 : index
    %c256 = arith.constant 256 : index
    %11 = vector.load %arg7[%c0_15, %c256] : memref<32x768xbf16, #tpu.memory_space<vmem>>, vector<16x128xbf16>
    tpu.vector_store %arg7[%c0_15, %c256], %10 {strides = array<i32>} : memref<32x768xbf16, #tpu.memory_space<vmem>>, vector<16x128xbf16>,
    %c0_16 = arith.constant 0 : index
    %c0_17 = arith.constant 0 : index
    %12 = vector.load %arg0[%c0_16, %c0_17] : memref<32x64xbf16, #tpu.memory_space<vmem>>, vector<16x64xbf16>
    %c0_18 = arith.constant 0 : index
    %c384 = arith.constant 384 : index
    %13 = vector.load %arg7[%c0_18, %c384] : memref<32x768xbf16, #tpu.memory_space<vmem>>, vector<16x64xbf16>
    tpu.vector_store %arg7[%c0_18, %c384], %12 {strides = array<i32>} : memref<32x768xbf16, #tpu.memory_space<vmem>>, vector<16x64xbf16>,
    %c16_19 = arith.constant 16 : index
    %c0_20 = arith.constant 0 : index
    %14 = vector.load %arg1[%c16_19, %c0_20] : memref<32x128xbf16, #tpu.memory_space<vmem>>, vector<16x128xbf16>
    %c16_21 = arith.constant 16 : index
    %c256_22 = arith.constant 256 : index
    %15 = vector.load %arg7[%c16_21, %c256_22] : memref<32x768xbf16, #tpu.memory_space<vmem>>, vector<16x128xbf16>
    tpu.vector_store %arg7[%c16_21, %c256_22], %14 {strides = array<i32>} : memref<32x768xbf16, #tpu.memory_space<vmem>>, vector<16x128xbf16>,
    %c16_23 = arith.constant 16 : index
    %c0_24 = arith.constant 0 : index
    %16 = vector.load %arg0[%c16_23, %c0_24] : memref<32x64xbf16, #tpu.memory_space<vmem>>, vector<16x64xbf16>
    %c16_25 = arith.constant 16 : index
    %c384_26 = arith.constant 384 : index
    %17 = vector.load %arg7[%c16_25, %c384_26] : memref<32x768xbf16, #tpu.memory_space<vmem>>, vector<16x64xbf16>
    tpu.vector_store %arg7[%c16_25, %c384_26], %16 {strides = array<i32>} : memref<32x768xbf16, #tpu.memory_space<vmem>>, vector<16x64xbf16>,
    %c1_27 = arith.constant 1 : index
    %c0_28 = arith.constant 0 : index
    %18 = vector.load %arg1[%c1_27, %c0_28] : memref<32x128xbf16, #tpu.memory_space<vmem>>, vector<15x128xbf16>
    %c0_29 = arith.constant 0 : index
    %c512 = arith.constant 512 : index
    %19 = vector.load %arg7[%c0_29, %c512] : memref<32x768xbf16, #tpu.memory_space<vmem>>, vector<15x128xbf16>
    tpu.vector_store %arg7[%c0_29, %c512], %18 {strides = array<i32>} : memref<32x768xbf16, #tpu.memory_space<vmem>>, vector<15x128xbf16>,
    %c1_30 = arith.constant 1 : index
    %c0_31 = arith.constant 0 : index
    %20 = vector.load %arg0[%c1_30, %c0_31] : memref<32x64xbf16, #tpu.memory_space<vmem>>, vector<15x64xbf16>
    %c0_32 = arith.constant 0 : index
    %c640 = arith.constant 640 : index
    %21 = vector.load %arg7[%c0_32, %c640] : memref<32x768xbf16, #tpu.memory_space<vmem>>, vector<15x64xbf16>
    tpu.vector_store %arg7[%c0_32, %c640], %20 {strides = array<i32>} : memref<32x768xbf16, #tpu.memory_space<vmem>>, vector<15x64xbf16>,
    %c17_33 = arith.constant 17 : index
    %c0_34 = arith.constant 0 : index
    %22 = vector.load %arg1[%c17_33, %c0_34] : memref<32x128xbf16, #tpu.memory_space<vmem>>, vector<15x128xbf16>
    %c16_35 = arith.constant 16 : index
    %c512_36 = arith.constant 512 : index
    %23 = vector.load %arg7[%c16_35, %c512_36] : memref<32x768xbf16, #tpu.memory_space<vmem>>, vector<15x128xbf16>
    tpu.vector_store %arg7[%c16_35, %c512_36], %22 {strides = array<i32>} : memref<32x768xbf16, #tpu.memory_space<vmem>>, vector<15x128xbf16>,
    %c17_37 = arith.constant 17 : index
    %c0_38 = arith.constant 0 : index
    %24 = vector.load %arg0[%c17_37, %c0_38] : memref<32x64xbf16, #tpu.memory_space<vmem>>, vector<15x64xbf16>
    %c16_39 = arith.constant 16 : index
    %c640_40 = arith.constant 640 : index
    %25 = vector.load %arg7[%c16_39, %c640_40] : memref<32x768xbf16, #tpu.memory_space<vmem>>, vector<15x64xbf16>
    tpu.vector_store %arg7[%c16_39, %c640_40], %24 {strides = array<i32>} : memref<32x768xbf16, #tpu.memory_space<vmem>>, vector<15x64xbf16>,
    %c0_41 = arith.constant 0 : index
    %c0_42 = arith.constant 0 : index
    %26 = vector.load %arg7[%c0_41, %c0_42] : memref<32x768xbf16, #tpu.memory_space<vmem>>, vector<32x768xbf16>
    %c0_43 = arith.constant 0 : index
    %c0_44 = arith.constant 0 : index
    %27 = vector.load %arg3[%c0_43, %c0_44] : memref<768x512xbf16, #tpu.memory_space<vmem>>, vector<768x512xbf16>
    %cst_45 = arith.constant dense<0.000000e+00> : vector<32x512xf32>
    %28 = tpu.matmul %26, %27, %cst_45 {dimension_numbers = #tpu.dot_dimension_numbers<[1], [0], [0], [1], [0, 0, 1, 1], [], []>} : vector<32x768xbf16>, vector<768x512xbf16>, vector<32x512xf32> -> vector<32x512xf32>
    %c0_46 = arith.constant 0 : index
    %c0_47 = arith.constant 0 : index
    %29 = vector.load %arg4[%c0_46, %c0_47] : memref<1x512xf32, #tpu.memory_space<vmem>>, vector<1x512xf32>
    %30 = vector.broadcast %29 : vector<1x512xf32> to vector<32x512xf32>
    %31 = arith.addf %28, %30 : vector<32x512xf32>
    %cst_48 = arith.constant 5.000000e-01 : f32
    %32 = vector.broadcast %cst_48 : f32 to vector<32x512xf32>
    %33 = arith.mulf %32, %31 : vector<32x512xf32>
    %34 = math.tanh %33 : vector<32x512xf32>
    %35 = vector.extract_strided_slice %34 {offsets = [0, 0], sizes = [32, 128], strides = [1, 1]} : vector<32x512xf32> to vector<32x128xf32>
    %cst_49 = arith.constant 1.000000e+00 : f32
    %36 = vector.broadcast %cst_49 : f32 to vector<32x128xf32>
    %37 = arith.addf %35, %36 : vector<32x128xf32>
    %cst_50 = arith.constant 5.000000e-01 : f32
    %38 = vector.broadcast %cst_50 : f32 to vector<32x128xf32>
    %39 = arith.mulf %38, %37 : vector<32x128xf32>
    %40 = vector.extract_strided_slice %34 {offsets = [0, 128], sizes = [32, 128], strides = [1, 1]} : vector<32x512xf32> to vector<32x128xf32>
    %cst_51 = arith.constant 1.000000e+00 : f32
    %41 = vector.broadcast %cst_51 : f32 to vector<32x128xf32>
    %42 = arith.addf %40, %41 : vector<32x128xf32>
    %cst_52 = arith.constant 5.000000e-01 : f32
    %43 = vector.broadcast %cst_52 : f32 to vector<32x128xf32>
    %44 = arith.mulf %43, %42 : vector<32x128xf32>
    %45 = vector.extract_strided_slice %34 {offsets = [0, 256], sizes = [32, 128], strides = [1, 1]} : vector<32x512xf32> to vector<32x128xf32>
    %cst_53 = arith.constant 1.000000e+00 : f32
    %46 = vector.broadcast %cst_53 : f32 to vector<32x128xf32>
    %47 = arith.addf %45, %46 : vector<32x128xf32>
    %cst_54 = arith.constant 5.000000e-01 : f32
    %48 = vector.broadcast %cst_54 : f32 to vector<32x128xf32>
    %49 = arith.mulf %48, %47 : vector<32x128xf32>
    %50 = vector.extract_strided_slice %34 {offsets = [0, 384], sizes = [32, 128], strides = [1, 1]} : vector<32x512xf32> to vector<32x128xf32>
    %c0_55 = arith.constant 0 : index
    %c0_56 = arith.constant 0 : index
    %51 = vector.load %arg2[%c0_55, %c0_56] : memref<32x128xf32, #tpu.memory_space<vmem>>, vector<32x128xf32>
    %52 = arith.mulf %44, %51 : vector<32x128xf32>
    %53 = arith.mulf %39, %50 : vector<32x128xf32>
    %54 = arith.addf %52, %53 : vector<32x128xf32>
    %55 = math.tanh %54 : vector<32x128xf32>
    %56 = arith.mulf %49, %55 : vector<32x128xf32>
    %c0_57 = arith.constant 0 : index
    %c0_58 = arith.constant 0 : index
    %57 = vector.load %arg6[%c0_57, %c0_58] : memref<32x128xf32, #tpu.memory_space<vmem>>, vector<32x128xf32>
    tpu.vector_store %arg6[%c0_57, %c0_58], %54 {strides = array<i32>} : memref<32x128xf32, #tpu.memory_space<vmem>>, vector<32x128xf32>,
    %c0_59 = arith.constant 0 : index
    %c0_60 = arith.constant 0 : index
    %58 = vector.load %arg5[%c0_59, %c0_60] : memref<32x128xf32, #tpu.memory_space<vmem>>, vector<32x128xf32>
    tpu.vector_store %arg5[%c0_59, %c0_60], %56 {strides = array<i32>} : memref<32x128xf32, #tpu.memory_space<vmem>>, vector<32x128xf32>,
    return
  }
}

</mosaic_0001>

<llo_original>
// kernel: convlstm_cell.1
$region0: #{convlstm_cell.1}
  #allocation0 [shape = 'u32[]', space=smem, size = 0x4, offset = 0x4, fixed_abs, tag = 'smem constant byte address 0x4 - core index']
  #allocation1 [shape = 'u32[144,128]{1,0:T(1,128)}', space=vmem, size = 0x12000, scoped, tag = 'internal scratch']
  #allocation2 [shape = 'bf16[32,768]{1,0:T(8,128)(2,1)}', space=vmem, size = 0xc000, scoped, tag = 'scratch operand']
  %s0 = inlined_call_operand.vmem [shape: bf16[32,64], index: 0, kind: input, shape index: {}]
  %s1 = inlined_call_operand.vmem [shape: bf16[32,128], index: 1, kind: input, shape index: {}]
  %s2 = inlined_call_operand.vmem [shape: f32[32,128], index: 2, kind: input, shape index: {}]
  %s3 = inlined_call_operand.vmem [shape: bf16[768,512], index: 3, kind: input, shape index: {}]
  %s4 = inlined_call_operand.vmem [shape: f32[1,512], index: 4, kind: input, shape index: {}]
  %s5 = inlined_call_operand.vmem [shape: f32[32,128], index: 5, kind: output, shape index: {0}]
  %s6 = inlined_call_operand.vmem [shape: f32[32,128], index: 6, kind: output, shape index: {1}]
  %7 = xla_tuple %s5, %s6
  %s8 = sld [smem:[#allocation0]]
  $region38: #{convlstm_cell.1} parent=0
    _
  %s10 = ssub.s32 1, %s8
  %s11 = scalar_select 0, %s10, %s8
  // Predicated region
  $region2: #{convlstm_cell.1} parent=0 // pred_check
    _
  $region3: #{convlstm_cell.1} parent=0 // pred_check_branch
    %13 = sbr.rel (0) target = $region5
  $region4: #{convlstm_cell.1} parent=0 // pred_region
    _
  $region5: #{convlstm_cell.1} parent=0 // pred_fallthru
    _
  // Predicated region
  $region6: #{convlstm_cell.1} parent=0 // pred_check
    _
  $region7: #{convlstm_cell.1} parent=0 // pred_check_branch
    %15 = sbr.rel (0) target = $region9
  $region8: #{convlstm_cell.1} parent=0 // pred_region
    _
  $region9: #{convlstm_cell.1} parent=0 // pred_fallthru
    _
  // Predicated region
  $region10: #{convlstm_cell.1} parent=0 // pred_check
    _
  $region11: #{convlstm_cell.1} parent=0 // pred_check_branch
    %17 = sbr.rel (0) target = $region13
  $region12: #{convlstm_cell.1} parent=0 // pred_region
    _
  $region13: #{convlstm_cell.1} parent=0 // pred_fallthru
    _
  // Predicated region
  $region14: #{convlstm_cell.1} parent=0 // pred_check
    _
  $region15: #{convlstm_cell.1} parent=0 // pred_check_branch
    %19 = sbr.rel (0) target = $region17
  $region16: #{convlstm_cell.1} parent=0 // pred_region
    _
  $region17: #{convlstm_cell.1} parent=0 // pred_fallthru
    _
  // Predicated region
  $region18: #{convlstm_cell.1} parent=0 // pred_check
    _
  $region19: #{convlstm_cell.1} parent=0 // pred_check_branch
    %21 = sbr.rel (0) target = $region21
  $region20: #{convlstm_cell.1} parent=0 // pred_region
    _
  $region21: #{convlstm_cell.1} parent=0 // pred_fallthru
    _
  %23 = vst [vmem:[#allocation2] sm:$0xff] 0
  %24 = vst [vmem:[#allocation2 + $0x8] sm:$0xff] 0
  %25 = vst [vmem:[#allocation2 + $0x10] sm:$0xff] 0
  %26 = vst [vmem:[#allocation2 + $0x18] sm:$0xff] 0
  %27 = vst [vmem:[#allocation2 + $0x20] sm:$0xff] 0
  %28 = vst [vmem:[#allocation2 + $0x28] sm:$0xff] 0
  %29 = vst [vmem:[#allocation2 + $0x30] sm:$0xff] 0
  %30 = vst [vmem:[#allocation2 + $0x38] sm:$0xff] 0
  %31 = vst [vmem:[#allocation2 + $0x40] sm:$0xff] 0
  %32 = vst [vmem:[#allocation2 + $0x48] sm:$0xff] 0
  %33 = vst [vmem:[#allocation2 + $0x50] sm:$0xff] 0
  %34 = vst [vmem:[#allocation2 + $0x58] sm:$0xff] 0
  %v35 = vld [vmem:[%s1] sm:$0xf]
  %v36 = vld [vmem:[%s1 + $0x4] sm:$0xf]
  %vm37 = vsmask.f32 256
  %vm38 = vsmask.f32 4368
  %vm39 = vmor %vm37, %vm38
  %v41 = vshrl.u32 %v35, 16
  %v43 = vrot.slane %v41, 7
  %v44 = vshll.u32 %v35, 16
  %v46 = vor.u32 %v43, %v44
  %v47 = vrot.slane %v43, 4
  %v49 = vshrl.u32 %v36, 16
  %v51 = vrot.slane %v49, 7
  %v52 = vshll.u32 %v36, 16
  %v54 = vor.u32 %v51, %v52
  %v55 = vsel %vm39, %v47, %v54
  %vm58 = vcmask 1043456
  %vm59 = vsmask.f32 7938
  %vm60 = vmand %vm58, %vm59
  %v61 = vld [vmem:[#allocation2] sm:$0xf]
  %v62 = vsel %vm60, %v46, %v61
  %63 = vst [vmem:[#allocation2] sm:$0xf] %v62
  %64 = vst [vmem:[#allocation2 + $0x18] sm:$0xf] %v55
  %v65 = vld [vmem:[%s0] sm:$0xf]
  %v66 = vld [vmem:[%s0 + $0x4] sm:$0xf]
  %v68 = vshrl.u32 %v65, 16
  %v70 = vrot.slane %v68, 7
  %v71 = vshll.u32 %v65, 16
  %v73 = vor.u32 %v70, %v71
  %v74 = vrot.slane %v70, 4
  %v76 = vshrl.u32 %v66, 16
  %v78 = vrot.slane %v76, 7
  %v79 = vshll.u32 %v66, 16
  %v81 = vor.u32 %v78, %v79
  %v82 = vsel %vm39, %v74, %v81
  %vm85 = vcmask 519168
  %vm86 = vmand %vm85, %vm59
  %v87 = vld [vmem:[#allocation2 + $0x4] sm:$0xf]
  %v88 = vsel %vm86, %v73, %v87
  %89 = vst [vmem:[#allocation2 + $0x4] sm:$0xf] %v88
  %vm90 = vcmask 519168
  %91 = vst.msk [vmem:[#allocation2 + $0x1c] sm:$0xf] %vm90, %v82
  %v92 = vld [vmem:[%s1 + $0x8] sm:$0xf]
  %v93 = vld [vmem:[%s1 + $0xc] sm:$0xf]
  %v95 = vshrl.u32 %v92, 16
  %v97 = vrot.slane %v95, 7
  %v98 = vshll.u32 %v92, 16
  %v100 = vor.u32 %v97, %v98
  %v101 = vrot.slane %v97, 4
  %v103 = vshrl.u32 %v93, 16
  %v105 = vrot.slane %v103, 7
  %v106 = vshll.u32 %v93, 16
  %v108 = vor.u32 %v105, %v106
  %v109 = vsel %vm39, %v101, %v108
  %v112 = vld [vmem:[#allocation2 + $0x30] sm:$0xf]
  %v113 = vsel %vm60, %v100, %v112
  %114 = vst [vmem:[#allocation2 + $0x30] sm:$0xf] %v113
  %115 = vst [vmem:[#allocation2 + $0x48] sm:$0xf] %v109
  %v116 = vld [vmem:[%s0 + $0x8] sm:$0xf]
  %v117 = vld [vmem:[%s0 + $0xc] sm:$0xf]
  %v119 = vshrl.u32 %v116, 16
  %v121 = vrot.slane %v119, 7
  %v122 = vshll.u32 %v116, 16
  %v124 = vor.u32 %v121, %v122
  %v125 = vrot.slane %v121, 4
  %v127 = vshrl.u32 %v117, 16
  %v129 = vrot.slane %v127, 7
  %v130 = vshll.u32 %v117, 16
  %v132 = vor.u32 %v129, %v130
  %v133 = vsel %vm39, %v125, %v132
  %v136 = vld [vmem:[#allocation2 + $0x34] sm:$0xf]
  %v137 = vsel %vm86, %v124, %v136
  %138 = vst [vmem:[#allocation2 + $0x34] sm:$0xf] %v137
  %139 = vst.msk [vmem:[#allocation2 + $0x4c] sm:$0xf] %vm90, %v133
  %v140 = vld [vmem:[%s1] sm:$0xf]
  %v141 = vld [vmem:[%s1 + $0x4] sm:$0xf]
  %142 = vst [vmem:[#allocation2 + $0x8] sm:$0xf] %v140
  %143 = vst [vmem:[#allocation2 + $0x20] sm:$0xf] %v141
  %v144 = vld [vmem:[%s0] sm:$0xf]
  %v145 = vld [vmem:[%s0 + $0x4] sm:$0xf]
  %146 = vst.msk [vmem:[#allocation2 + $0xc] sm:$0xf] %vm90, %v144
  %147 = vst.msk [vmem:[#allocation2 + $0x24] sm:$0xf] %vm90, %v145
  %v148 = vld [vmem:[%s1 + $0x8] sm:$0xf]
  %v149 = vld [vmem:[%s1 + $0xc] sm:$0xf]
  %150 = vst [vmem:[#allocation2 + $0x38] sm:$0xf] %v148
  %151 = vst [vmem:[#allocation2 + $0x50] sm:$0xf] %v149
  %v152 = vld [vmem:[%s0 + $0x8] sm:$0xf]
  %v153 = vld [vmem:[%s0 + $0xc] sm:$0xf]
  %154 = vst.msk [vmem:[#allocation2 + $0x3c] sm:$0xf] %vm90, %v152
  %155 = vst.msk [vmem:[#allocation2 + $0x54] sm:$0xf] %vm90, %v153
  %v156 = vld [vmem:[%s1] sm:$0xf]
  %v157 = vld [vmem:[%s1 + $0x4] sm:$0xf]
  %vm158 = vsmask.f32 3328
  %vm159 = vsmask.f32 7440
  %vm160 = vmor %vm158, %vm159
  %v162 = vshrl.u32 %v156, 16
  %v164 = vrot.slane %v162, 4
  %v165 = vshll.u32 %v156, 16
  %v167 = vrot.slane %v165, 5
  %v168 = vor.u32 %v164, %v167
  %v169 = vrot.slane %v168, 4
  %v171 = vshll.u32 %v157, 16
  %v173 = vrot.slane %v171, 5
  %v174 = vsel %vm160, %v169, %v173
  %v175 = vshrl.u32 %v157, 16
  %v177 = vrot.slane %v175, 4
  %v178 = vor.u32 %v177, %v173
  %v179 = vrot.slane %v178, 4
  %182 = vst [vmem:[#allocation2 + $0x10] sm:$0xf] %v174
  %vm183 = vmand %vm58, %vm158
  %v184 = vld [vmem:[#allocation2 + $0x28] sm:$0xf]
  %v185 = vsel %vm183, %v179, %v184
  %186 = vst [vmem:[#allocation2 + $0x28] sm:$0xf] %v185
  %v187 = vld [vmem:[%s0] sm:$0xf]
  %v188 = vld [vmem:[%s0 + $0x4] sm:$0xf]
  %v190 = vshrl.u32 %v187, 16
  %v192 = vrot.slane %v190, 4
  %v193 = vshll.u32 %v187, 16
  %v195 = vrot.slane %v193, 5
  %v196 = vor.u32 %v192, %v195
  %v197 = vrot.slane %v196, 4
  %v199 = vshll.u32 %v188, 16
  %v201 = vrot.slane %v199, 5
  %v202 = vsel %vm160, %v197, %v201
  %v203 = vshrl.u32 %v188, 16
  %v205 = vrot.slane %v203, 4
  %v206 = vor.u32 %v205, %v201
  %v207 = vrot.slane %v206, 4
  %210 = vst.msk [vmem:[#allocation2 + $0x14] sm:$0xf] %vm90, %v202
  %vm211 = vmand %vm85, %vm158
  %v212 = vld [vmem:[#allocation2 + $0x2c] sm:$0xf]
  %v213 = vsel %vm211, %v207, %v212
  %214 = vst [vmem:[#allocation2 + $0x2c] sm:$0xf] %v213
  %v215 = vld [vmem:[%s1 + $0x8] sm:$0xf]
  %v216 = vld [vmem:[%s1 + $0xc] sm:$0xf]
  %v218 = vshrl.u32 %v215, 16
  %v220 = vrot.slane %v218, 4
  %v221 = vshll.u32 %v215, 16
  %v223 = vrot.slane %v221, 5
  %v224 = vor.u32 %v220, %v223
  %v225 = vrot.slane %v224, 4
  %v227 = vshll.u32 %v216, 16
  %v229 = vrot.slane %v227, 5
  %v230 = vsel %vm160, %v225, %v229
  %v231 = vshrl.u32 %v216, 16
  %v233 = vrot.slane %v231, 4
  %v234 = vor.u32 %v233, %v229
  %v235 = vrot.slane %v234, 4
  %238 = vst [vmem:[#allocation2 + $0x40] sm:$0xf] %v230
  %v239 = vld [vmem:[#allocation2 + $0x58] sm:$0xf]
  %v240 = vsel %vm183, %v235, %v239
  %241 = vst [vmem:[#allocation2 + $0x58] sm:$0xf] %v240
  %v242 = vld [vmem:[%s0 + $0x8] sm:$0xf]
  %v243 = vld [vmem:[%s0 + $0xc] sm:$0xf]
  %v245 = vshrl.u32 %v242, 16
  %v247 = vrot.slane %v245, 4
  %v248 = vshll.u32 %v242, 16
  %v250 = vrot.slane %v248, 5
  %v251 = vor.u32 %v247, %v250
  %v252 = vrot.slane %v251, 4
  %v254 = vshll.u32 %v243, 16
  %v256 = vrot.slane %v254, 5
  %v257 = vsel %vm160, %v252, %v256
  %v258 = vshrl.u32 %v243, 16
  %v260 = vrot.slane %v258, 4
  %v261 = vor.u32 %v260, %v256
  %v262 = vrot.slane %v261, 4
  %265 = vst.msk [vmem:[#allocation2 + $0x44] sm:$0xf] %vm90, %v257
  %v266 = vld [vmem:[#allocation2 + $0x5c] sm:$0xf]
  %v267 = vsel %vm211, %v262, %v266
  %268 = vst [vmem:[#allocation2 + $0x5c] sm:$0xf] %v267
  %v269 = vld [vmem:[#allocation2] sm:$0xff]
  %v270 = vld [vmem:[#allocation2 + $0x8] sm:$0xff]
  %v271 = vld [vmem:[#allocation2 + $0x10] sm:$0xff]
  %v272 = vld [vmem:[#allocation2 + $0x18] sm:$0xff]
  %v273 = vld [vmem:[#allocation2 + $0x20] sm:$0xff]
  %v274 = vld [vmem:[#allocation2 + $0x28] sm:$0xff]
  %v275 = vld [vmem:[#allocation2 + $0x30] sm:$0xff]
  %v276 = vld [vmem:[#allocation2 + $0x38] sm:$0xff]
  %v277 = vld [vmem:[#allocation2 + $0x40] sm:$0xff]
  %v278 = vld [vmem:[#allocation2 + $0x48] sm:$0xff]
  %v279 = vld [vmem:[#allocation2 + $0x50] sm:$0xff]
  %v280 = vld [vmem:[#allocation2 + $0x58] sm:$0xff]
  %v281 = vld [vmem:[%s3] sm:$0xff]
  %v282 = vld [vmem:[%s3 + $0x8] sm:$0xff]
  %v283 = vld [vmem:[%s3 + $0x10] sm:$0xff]
  %v284 = vld [vmem:[%s3 + $0x18] sm:$0xff]
  %v285 = vld [vmem:[%s3 + $0x20] sm:$0xff]
  %v286 = vld [vmem:[%s3 + $0x28] sm:$0xff]
  %v287 = vld [vmem:[%s3 + $0x30] sm:$0xff]
  %v288 = vld [vmem:[%s3 + $0x38] sm:$0xff]
  %v289 = vld [vmem:[%s3 + $0x40] sm:$0xff]
  %v290 = vld [vmem:[%s3 + $0x48] sm:$0xff]
  %v291 = vld [vmem:[%s3 + $0x50] sm:$0xff]
  %v292 = vld [vmem:[%s3 + $0x58] sm:$0xff]
  %v293 = vld [vmem:[%s3 + $0x60] sm:$0xff]
  %v294 = vld [vmem:[%s3 + $0x68] sm:$0xff]
  %v295 = vld [vmem:[%s3 + $0x70] sm:$0xff]
  %v296 = vld [vmem:[%s3 + $0x78] sm:$0xff]
  %v297 = vld [vmem:[%s3 + $0x80] sm:$0xff]
  %v298 = vld [vmem:[%s3 + $0x88] sm:$0xff]
  %v299 = vld [vmem:[%s3 + $0x90] sm:$0xff]
  %v300 = vld [vmem:[%s3 + $0x98] sm:$0xff]
  %v301 = vld [vmem:[%s3 + $0xa0] sm:$0xff]
  %v302 = vld [vmem:[%s3 + $0xa8] sm:$0xff]
  %v303 = vld [vmem:[%s3 + $0xb0] sm:$0xff]
  %v304 = vld [vmem:[%s3 + $0xb8] sm:$0xff]
  %v305 = vld [vmem:[%s3 + $0xc0] sm:$0xff]
  %v306 = vld [vmem:[%s3 + $0xc8] sm:$0xff]
  %v307 = vld [vmem:[%s3 + $0xd0] sm:$0xff]
  %v308 = vld [vmem:[%s3 + $0xd8] sm:$0xff]
  %v309 = vld [vmem:[%s3 + $0xe0] sm:$0xff]
  %v310 = vld [vmem:[%s3 + $0xe8] sm:$0xff]
  %v311 = vld [vmem:[%s3 + $0xf0] sm:$0xff]
  %v312 = vld [vmem:[%s3 + $0xf8] sm:$0xff]
  %v313 = vld [vmem:[%s3 + $0x100] sm:$0xff]
  %v314 = vld [vmem:[%s3 + $0x108] sm:$0xff]
  %v315 = vld [vmem:[%s3 + $0x110] sm:$0xff]
  %v316 = vld [vmem:[%s3 + $0x118] sm:$0xff]
  %v317 = vld [vmem:[%s3 + $0x120] sm:$0xff]
  %v318 = vld [vmem:[%s3 + $0x128] sm:$0xff]
  %v319 = vld [vmem:[%s3 + $0x130] sm:$0xff]
  %v320 = vld [vmem:[%s3 + $0x138] sm:$0xff]
  %v321 = vld [vmem:[%s3 + $0x140] sm:$0xff]
  %v322 = vld [vmem:[%s3 + $0x148] sm:$0xff]
  %v323 = vld [vmem:[%s3 + $0x150] sm:$0xff]
  %v324 = vld [vmem:[%s3 + $0x158] sm:$0xff]
  %v325 = vld [vmem:[%s3 + $0x160] sm:$0xff]
  %v326 = vld [vmem:[%s3 + $0x168] sm:$0xff]
  %v327 = vld [vmem:[%s3 + $0x170] sm:$0xff]
  %v328 = vld [vmem:[%s3 + $0x178] sm:$0xff]
  %v329 = vld [vmem:[%s3 + $0x180] sm:$0xff]
  %v330 = vld [vmem:[%s3 + $0x188] sm:$0xff]
  %v331 = vld [vmem:[%s3 + $0x190] sm:$0xff]
  %v332 = vld [vmem:[%s3 + $0x198] sm:$0xff]
  %v333 = vld [vmem:[%s3 + $0x1a0] sm:$0xff]
  %v334 = vld [vmem:[%s3 + $0x1a8] sm:$0xff]
  %v335 = vld [vmem:[%s3 + $0x1b0] sm:$0xff]
  %v336 = vld [vmem:[%s3 + $0x1b8] sm:$0xff]
  %v337 = vld [vmem:[%s3 + $0x1c0] sm:$0xff]
  %v338 = vld [vmem:[%s3 + $0x1c8] sm:$0xff]
  %v339 = vld [vmem:[%s3 + $0x1d0] sm:$0xff]
  %v340 = vld [vmem:[%s3 + $0x1d8] sm:$0xff]
  %v341 = vld [vmem:[%s3 + $0x1e0] sm:$0xff]
  %v342 = vld [vmem:[%s3 + $0x1e8] sm:$0xff]
  %v343 = vld [vmem:[%s3 + $0x1f0] sm:$0xff]
  %v344 = vld [vmem:[%s3 + $0x1f8] sm:$0xff]
  %v345 = vld [vmem:[%s3 + $0x200] sm:$0xff]
  %v346 = vld [vmem:[%s3 + $0x208] sm:$0xff]
  %v347 = vld [vmem:[%s3 + $0x210] sm:$0xff]
  %v348 = vld [vmem:[%s3 + $0x218] sm:$0xff]
  %v349 = vld [vmem:[%s3 + $0x220] sm:$0xff]
  %v350 = vld [vmem:[%s3 + $0x228] sm:$0xff]
  %v351 = vld [vmem:[%s3 + $0x230] sm:$0xff]
  %v352 = vld [vmem:[%s3 + $0x238] sm:$0xff]
  %v353 = vld [vmem:[%s3 + $0x240] sm:$0xff]
  %v354 = vld [vmem:[%s3 + $0x248] sm:$0xff]
  %v355 = vld [vmem:[%s3 + $0x250] sm:$0xff]
  %v356 = vld [vmem:[%s3 + $0x258] sm:$0xff]
  %v357 = vld [vmem:[%s3 + $0x260] sm:$0xff]
  %v358 = vld [vmem:[%s3 + $0x268] sm:$0xff]
  %v359 = vld [vmem:[%s3 + $0x270] sm:$0xff]
  %v360 = vld [vmem:[%s3 + $0x278] sm:$0xff]
  %v361 = vld [vmem:[%s3 + $0x280] sm:$0xff]
  %v362 = vld [vmem:[%s3 + $0x288] sm:$0xff]
  %v363 = vld [vmem:[%s3 + $0x290] sm:$0xff]
  %v364 = vld [vmem:[%s3 + $0x298] sm:$0xff]
  %v365 = vld [vmem:[%s3 + $0x2a0] sm:$0xff]
  %v366 = vld [vmem:[%s3 + $0x2a8] sm:$0xff]
  %v367 = vld [vmem:[%s3 + $0x2b0] sm:$0xff]
  %v368 = vld [vmem:[%s3 + $0x2b8] sm:$0xff]
  %v369 = vld [vmem:[%s3 + $0x2c0] sm:$0xff]
  %v370 = vld [vmem:[%s3 + $0x2c8] sm:$0xff]
  %v371 = vld [vmem:[%s3 + $0x2d0] sm:$0xff]
  %v372 = vld [vmem:[%s3 + $0x2d8] sm:$0xff]
  %v373 = vld [vmem:[%s3 + $0x2e0] sm:$0xff]
  %v374 = vld [vmem:[%s3 + $0x2e8] sm:$0xff]
  %v375 = vld [vmem:[%s3 + $0x2f0] sm:$0xff]
  %v376 = vld [vmem:[%s3 + $0x2f8] sm:$0xff]
  %v377 = vld [vmem:[%s3 + $0x300] sm:$0xff]
  %v378 = vld [vmem:[%s3 + $0x308] sm:$0xff]
  %v379 = vld [vmem:[%s3 + $0x310] sm:$0xff]
  %v380 = vld [vmem:[%s3 + $0x318] sm:$0xff]
  %v381 = vld [vmem:[%s3 + $0x320] sm:$0xff]
  %v382 = vld [vmem:[%s3 + $0x328] sm:$0xff]
  %v383 = vld [vmem:[%s3 + $0x330] sm:$0xff]
  %v384 = vld [vmem:[%s3 + $0x338] sm:$0xff]
  %v385 = vld [vmem:[%s3 + $0x340] sm:$0xff]
  %v386 = vld [vmem:[%s3 + $0x348] sm:$0xff]
  %v387 = vld [vmem:[%s3 + $0x350] sm:$0xff]
  %v388 = vld [vmem:[%s3 + $0x358] sm:$0xff]
  %v389 = vld [vmem:[%s3 + $0x360] sm:$0xff]
  %v390 = vld [vmem:[%s3 + $0x368] sm:$0xff]
  %v391 = vld [vmem:[%s3 + $0x370] sm:$0xff]
  %v392 = vld [vmem:[%s3 + $0x378] sm:$0xff]
  %v393 = vld [vmem:[%s3 + $0x380] sm:$0xff]
  %v394 = vld [vmem:[%s3 + $0x388] sm:$0xff]
  %v395 = vld [vmem:[%s3 + $0x390] sm:$0xff]
  %v396 = vld [vmem:[%s3 + $0x398] sm:$0xff]
  %v397 = vld [vmem:[%s3 + $0x3a0] sm:$0xff]
  %v398 = vld [vmem:[%s3 + $0x3a8] sm:$0xff]
  %v399 = vld [vmem:[%s3 + $0x3b0] sm:$0xff]
  %v400 = vld [vmem:[%s3 + $0x3b8] sm:$0xff]
  %v401 = vld [vmem:[%s3 + $0x3c0] sm:$0xff]
  %v402 = vld [vmem:[%s3 + $0x3c8] sm:$0xff]
  %v403 = vld [vmem:[%s3 + $0x3d0] sm:$0xff]
  %v404 = vld [vmem:[%s3 + $0x3d8] sm:$0xff]
  %v405 = vld [vmem:[%s3 + $0x3e0] sm:$0xff]
  %v406 = vld [vmem:[%s3 + $0x3e8] sm:$0xff]
  %v407 = vld [vmem:[%s3 + $0x3f0] sm:$0xff]
  %v408 = vld [vmem:[%s3 + $0x3f8] sm:$0xff]
  %v409 = vld [vmem:[%s3 + $0x400] sm:$0xff]
  %v410 = vld [vmem:[%s3 + $0x408] sm:$0xff]
  %v411 = vld [vmem:[%s3 + $0x410] sm:$0xff]
  %v412 = vld [vmem:[%s3 + $0x418] sm:$0xff]
  %v413 = vld [vmem:[%s3 + $0x420] sm:$0xff]
  %v414 = vld [vmem:[%s3 + $0x428] sm:$0xff]
  %v415 = vld [vmem:[%s3 + $0x430] sm:$0xff]
  %v416 = vld [vmem:[%s3 + $0x438] sm:$0xff]
  %v417 = vld [vmem:[%s3 + $0x440] sm:$0xff]
  %v418 = vld [vmem:[%s3 + $0x448] sm:$0xff]
  %v419 = vld [vmem:[%s3 + $0x450] sm:$0xff]
  %v420 = vld [vmem:[%s3 + $0x458] sm:$0xff]
  %v421 = vld [vmem:[%s3 + $0x460] sm:$0xff]
  %v422 = vld [vmem:[%s3 + $0x468] sm:$0xff]
  %v423 = vld [vmem:[%s3 + $0x470] sm:$0xff]
  %v424 = vld [vmem:[%s3 + $0x478] sm:$0xff]
  %v425 = vld [vmem:[%s3 + $0x480] sm:$0xff]
  %v426 = vld [vmem:[%s3 + $0x488] sm:$0xff]
  %v427 = vld [vmem:[%s3 + $0x490] sm:$0xff]
  %v428 = vld [vmem:[%s3 + $0x498] sm:$0xff]
  %v429 = vld [vmem:[%s3 + $0x4a0] sm:$0xff]
  %v430 = vld [vmem:[%s3 + $0x4a8] sm:$0xff]
  %v431 = vld [vmem:[%s3 + $0x4b0] sm:$0xff]
  %v432 = vld [vmem:[%s3 + $0x4b8] sm:$0xff]
  %v433 = vld [vmem:[%s3 + $0x4c0] sm:$0xff]
  %v434 = vld [vmem:[%s3 + $0x4c8] sm:$0xff]
  %v435 = vld [vmem:[%s3 + $0x4d0] sm:$0xff]
  %v436 = vld [vmem:[%s3 + $0x4d8] sm:$0xff]
  %v437 = vld [vmem:[%s3 + $0x4e0] sm:$0xff]
  %v438 = vld [vmem:[%s3 + $0x4e8] sm:$0xff]
  %v439 = vld [vmem:[%s3 + $0x4f0] sm:$0xff]
  %v440 = vld [vmem:[%s3 + $0x4f8] sm:$0xff]
  %v441 = vld [vmem:[%s3 + $0x500] sm:$0xff]
  %v442 = vld [vmem:[%s3 + $0x508] sm:$0xff]
  %v443 = vld [vmem:[%s3 + $0x510] sm:$0xff]
  %v444 = vld [vmem:[%s3 + $0x518] sm:$0xff]
  %v445 = vld [vmem:[%s3 + $0x520] sm:$0xff]
  %v446 = vld [vmem:[%s3 + $0x528] sm:$0xff]
  %v447 = vld [vmem:[%s3 + $0x530] sm:$0xff]
  %v448 = vld [vmem:[%s3 + $0x538] sm:$0xff]
  %v449 = vld [vmem:[%s3 + $0x540] sm:$0xff]
  %v450 = vld [vmem:[%s3 + $0x548] sm:$0xff]
  %v451 = vld [vmem:[%s3 + $0x550] sm:$0xff]
  %v452 = vld [vmem:[%s3 + $0x558] sm:$0xff]
  %v453 = vld [vmem:[%s3 + $0x560] sm:$0xff]
  %v454 = vld [vmem:[%s3 + $0x568] sm:$0xff]
  %v455 = vld [vmem:[%s3 + $0x570] sm:$0xff]
  %v456 = vld [vmem:[%s3 + $0x578] sm:$0xff]
  %v457 = vld [vmem:[%s3 + $0x580] sm:$0xff]
  %v458 = vld [vmem:[%s3 + $0x588] sm:$0xff]
  %v459 = vld [vmem:[%s3 + $0x590] sm:$0xff]
  %v460 = vld [vmem:[%s3 + $0x598] sm:$0xff]
  %v461 = vld [vmem:[%s3 + $0x5a0] sm:$0xff]
  %v462 = vld [vmem:[%s3 + $0x5a8] sm:$0xff]
  %v463 = vld [vmem:[%s3 + $0x5b0] sm:$0xff]
  %v464 = vld [vmem:[%s3 + $0x5b8] sm:$0xff]
  %v465 = vld [vmem:[%s3 + $0x5c0] sm:$0xff]
  %v466 = vld [vmem:[%s3 + $0x5c8] sm:$0xff]
  %v467 = vld [vmem:[%s3 + $0x5d0] sm:$0xff]
  %v468 = vld [vmem:[%s3 + $0x5d8] sm:$0xff]
  %v469 = vld [vmem:[%s3 + $0x5e0] sm:$0xff]
  %v470 = vld [vmem:[%s3 + $0x5e8] sm:$0xff]
  %v471 = vld [vmem:[%s3 + $0x5f0] sm:$0xff]
  %v472 = vld [vmem:[%s3 + $0x5f8] sm:$0xff]
  %v473 = vld [vmem:[%s4] sm:$0xf]
  %v475 = vlaneseq
  %v476 = vshrl.u32 %v475, 7
  %v477 = vsub.s32 0, %v476
  %v478 = vrot.slane %v473, %v477
  %v479 = vlaneseq
  %v480 = vshrl.u32 %v479, 7
  %v481 = vsub.s32 1, %v480
  %v482 = vrot.slane %v473, %v481
  %v483 = vlaneseq
  %v484 = vshrl.u32 %v483, 7
  %v485 = vsub.s32 2, %v484
  %v486 = vrot.slane %v473, %v485
  %v487 = vlaneseq
  %v488 = vshrl.u32 %v487, 7
  %v489 = vsub.s32 3, %v488
  %v490 = vrot.slane %v473, %v489
  %v507 = vunpack.c.l.b16 %v269
  %v508 = vunpack.c.h.b16 %v269
  %v509 = vunpack.c.l.b16 %v270
  %v510 = vunpack.c.h.b16 %v270
  %v511 = vunpack.c.l.b16 %v271
  %v512 = vunpack.c.h.b16 %v271
  %v513 = vunpack.c.l.b16 %v272
  %v514 = vunpack.c.h.b16 %v272
  %v515 = vunpack.c.l.b16 %v273
  %v516 = vunpack.c.h.b16 %v273
  %v517 = vunpack.c.l.b16 %v274
  %v518 = vunpack.c.h.b16 %v274
  %v519 = vunpack.c.l.b16 %v275
  %v520 = vunpack.c.h.b16 %v275
  %v521 = vunpack.c.l.b16 %v276
  %v522 = vunpack.c.h.b16 %v276
  %v523 = vunpack.c.l.b16 %v277
  %v524 = vunpack.c.h.b16 %v277
  %v525 = vunpack.c.l.b16 %v278
  %v526 = vunpack.c.h.b16 %v278
  %v527 = vunpack.c.l.b16 %v279
  %v528 = vunpack.c.h.b16 %v279
  %v529 = vunpack.c.l.b16 %v280
  %v530 = vunpack.c.h.b16 %v280
  %v531 = vpack.c.b16 %v513, %v507
  %v532 = vpack.c.b16 %v514, %v508
  %v533 = vpack.c.b16 %v515, %v509
  %v534 = vpack.c.b16 %v516, %v510
  %v535 = vpack.c.b16 %v517, %v511
  %v536 = vpack.c.b16 %v518, %v512
  %v537 = vpack.c.b16 %v525, %v519
  %v538 = vpack.c.b16 %v526, %v520
  %v539 = vpack.c.b16 %v527, %v521
  %v540 = vpack.c.b16 %v528, %v522
  %v541 = vpack.c.b16 %v529, %v523
  %v542 = vpack.c.b16 %v530, %v524
  %v747 = vunpack.c.l.b16 %v281
  %v748 = vunpack.c.h.b16 %v281
  %v749 = vunpack.c.l.b16 %v282
  %v750 = vunpack.c.h.b16 %v282
  %v751 = vunpack.c.l.b16 %v283
  %v752 = vunpack.c.h.b16 %v283
  %v753 = vunpack.c.l.b16 %v284
  %v754 = vunpack.c.h.b16 %v284
  %v755 = vunpack.c.l.b16 %v285
  %v756 = vunpack.c.h.b16 %v285
  %v757 = vunpack.c.l.b16 %v286
  %v758 = vunpack.c.h.b16 %v286
  %v759 = vunpack.c.l.b16 %v287
  %v760 = vunpack.c.h.b16 %v287
  %v761 = vunpack.c.l.b16 %v288
  %v762 = vunpack.c.h.b16 %v288
  %v763 = vunpack.c.l.b16 %v289
  %v764 = vunpack.c.h.b16 %v289
  %v765 = vunpack.c.l.b16 %v290
  %v766 = vunpack.c.h.b16 %v290
  %v767 = vunpack.c.l.b16 %v291
  %v768 = vunpack.c.h.b16 %v291
  %v769 = vunpack.c.l.b16 %v292
  %v770 = vunpack.c.h.b16 %v292
  %v771 = vunpack.c.l.b16 %v293
  %v772 = vunpack.c.h.b16 %v293
  %v773 = vunpack.c.l.b16 %v294
  %v774 = vunpack.c.h.b16 %v294
  %v775 = vunpack.c.l.b16 %v295
  %v776 = vunpack.c.h.b16 %v295
  %v777 = vunpack.c.l.b16 %v296
  %v778 = vunpack.c.h.b16 %v296
  %v779 = vunpack.c.l.b16 %v297
  %v780 = vunpack.c.h.b16 %v297
  %v781 = vunpack.c.l.b16 %v298
  %v782 = vunpack.c.h.b16 %v298
  %v783 = vunpack.c.l.b16 %v299
  %v784 = vunpack.c.h.b16 %v299
  %v785 = vunpack.c.l.b16 %v300
  %v786 = vunpack.c.h.b16 %v300
  %v787 = vunpack.c.l.b16 %v301
  %v788 = vunpack.c.h.b16 %v301
  %v789 = vunpack.c.l.b16 %v302
  %v790 = vunpack.c.h.b16 %v302
  %v791 = vunpack.c.l.b16 %v303
  %v792 = vunpack.c.h.b16 %v303
  %v793 = vunpack.c.l.b16 %v304
  %v794 = vunpack.c.h.b16 %v304
  %v795 = vunpack.c.l.b16 %v305
  %v796 = vunpack.c.h.b16 %v305
  %v797 = vunpack.c.l.b16 %v306
  %v798 = vunpack.c.h.b16 %v306
  %v799 = vunpack.c.l.b16 %v307
  %v800 = vunpack.c.h.b16 %v307
  %v801 = vunpack.c.l.b16 %v308
  %v802 = vunpack.c.h.b16 %v308
  %v803 = vunpack.c.l.b16 %v309
  %v804 = vunpack.c.h.b16 %v309
  %v805 = vunpack.c.l.b16 %v310
  %v806 = vunpack.c.h.b16 %v310
  %v807 = vunpack.c.l.b16 %v311
  %v808 = vunpack.c.h.b16 %v311
  %v809 = vunpack.c.l.b16 %v312
  %v810 = vunpack.c.h.b16 %v312
  %v811 = vunpack.c.l.b16 %v313
  %v812 = vunpack.c.h.b16 %v313
  %v813 = vunpack.c.l.b16 %v314
  %v814 = vunpack.c.h.b16 %v314
  %v815 = vunpack.c.l.b16 %v315
  %v816 = vunpack.c.h.b16 %v315
  %v817 = vunpack.c.l.b16 %v316
  %v818 = vunpack.c.h.b16 %v316
  %v819 = vunpack.c.l.b16 %v317
  %v820 = vunpack.c.h.b16 %v317
  %v821 = vunpack.c.l.b16 %v318
  %v822 = vunpack.c.h.b16 %v318
  %v823 = vunpack.c.l.b16 %v319
  %v824 = vunpack.c.h.b16 %v319
  %v825 = vunpack.c.l.b16 %v320
  %v826 = vunpack.c.h.b16 %v320
  %v827 = vunpack.c.l.b16 %v321
  %v828 = vunpack.c.h.b16 %v321
  %v829 = vunpack.c.l.b16 %v322
  %v830 = vunpack.c.h.b16 %v322
  %v831 = vunpack.c.l.b16 %v323
  %v832 = vunpack.c.h.b16 %v323
  %v833 = vunpack.c.l.b16 %v324
  %v834 = vunpack.c.h.b16 %v324
  %v835 = vunpack.c.l.b16 %v325
  %v836 = vunpack.c.h.b16 %v325
  %v837 = vunpack.c.l.b16 %v326
  %v838 = vunpack.c.h.b16 %v326
  %v839 = vunpack.c.l.b16 %v327
  %v840 = vunpack.c.h.b16 %v327
  %v841 = vunpack.c.l.b16 %v328
  %v842 = vunpack.c.h.b16 %v328
  %v843 = vunpack.c.l.b16 %v329
  %v844 = vunpack.c.h.b16 %v329
  %v845 = vunpack.c.l.b16 %v330
  %v846 = vunpack.c.h.b16 %v330
  %v847 = vunpack.c.l.b16 %v331
  %v848 = vunpack.c.h.b16 %v331
  %v849 = vunpack.c.l.b16 %v332
  %v850 = vunpack.c.h.b16 %v332
  %v851 = vunpack.c.l.b16 %v333
  %v852 = vunpack.c.h.b16 %v333
  %v853 = vunpack.c.l.b16 %v334
  %v854 = vunpack.c.h.b16 %v334
  %v855 = vunpack.c.l.b16 %v335
  %v856 = vunpack.c.h.b16 %v335
  %v857 = vunpack.c.l.b16 %v336
  %v858 = vunpack.c.h.b16 %v336
  %v859 = vunpack.c.l.b16 %v337
  %v860 = vunpack.c.h.b16 %v337
  %v861 = vunpack.c.l.b16 %v338
  %v862 = vunpack.c.h.b16 %v338
  %v863 = vunpack.c.l.b16 %v339
  %v864 = vunpack.c.h.b16 %v339
  %v865 = vunpack.c.l.b16 %v340
  %v866 = vunpack.c.h.b16 %v340
  %v867 = vunpack.c.l.b16 %v341
  %v868 = vunpack.c.h.b16 %v341
  %v869 = vunpack.c.l.b16 %v342
  %v870 = vunpack.c.h.b16 %v342
  %v871 = vunpack.c.l.b16 %v343
  %v872 = vunpack.c.h.b16 %v343
  %v873 = vunpack.c.l.b16 %v344
  %v874 = vunpack.c.h.b16 %v344
  %v875 = vunpack.c.l.b16 %v345
  %v876 = vunpack.c.h.b16 %v345
  %v877 = vunpack.c.l.b16 %v346
  %v878 = vunpack.c.h.b16 %v346
  %v879 = vunpack.c.l.b16 %v347
  %v880 = vunpack.c.h.b16 %v347
  %v881 = vunpack.c.l.b16 %v348
  %v882 = vunpack.c.h.b16 %v348
  %v883 = vunpack.c.l.b16 %v349
  %v884 = vunpack.c.h.b16 %v349
  %v885 = vunpack.c.l.b16 %v350
  %v886 = vunpack.c.h.b16 %v350
  %v887 = vunpack.c.l.b16 %v351
  %v888 = vunpack.c.h.b16 %v351
  %v889 = vunpack.c.l.b16 %v352
  %v890 = vunpack.c.h.b16 %v352
  %v891 = vunpack.c.l.b16 %v353
  %v892 = vunpack.c.h.b16 %v353
  %v893 = vunpack.c.l.b16 %v354
  %v894 = vunpack.c.h.b16 %v354
  %v895 = vunpack.c.l.b16 %v355
  %v896 = vunpack.c.h.b16 %v355
  %v897 = vunpack.c.l.b16 %v356
  %v898 = vunpack.c.h.b16 %v356
  %v899 = vunpack.c.l.b16 %v357
  %v900 = vunpack.c.h.b16 %v357
  %v901 = vunpack.c.l.b16 %v358
  %v902 = vunpack.c.h.b16 %v358
  %v903 = vunpack.c.l.b16 %v359
  %v904 = vunpack.c.h.b16 %v359
  %v905 = vunpack.c.l.b16 %v360
  %v906 = vunpack.c.h.b16 %v360
  %v907 = vunpack.c.l.b16 %v361
  %v908 = vunpack.c.h.b16 %v361
  %v909 = vunpack.c.l.b16 %v362
  %v910 = vunpack.c.h.b16 %v362
  %v911 = vunpack.c.l.b16 %v363
  %v912 = vunpack.c.h.b16 %v363
  %v913 = vunpack.c.l.b16 %v364
  %v914 = vunpack.c.h.b16 %v364
  %v915 = vunpack.c.l.b16 %v365
  %v916 = vunpack.c.h.b16 %v365
  %v917 = vunpack.c.l.b16 %v366
  %v918 = vunpack.c.h.b16 %v366
  %v919 = vunpack.c.l.b16 %v367
  %v920 = vunpack.c.h.b16 %v367
  %v921 = vunpack.c.l.b16 %v368
  %v922 = vunpack.c.h.b16 %v368
  %v923 = vunpack.c.l.b16 %v369
  %v924 = vunpack.c.h.b16 %v369
  %v925 = vunpack.c.l.b16 %v370
  %v926 = vunpack.c.h.b16 %v370
  %v927 = vunpack.c.l.b16 %v371
  %v928 = vunpack.c.h.b16 %v371
  %v929 = vunpack.c.l.b16 %v372
  %v930 = vunpack.c.h.b16 %v372
  %v931 = vunpack.c.l.b16 %v373
  %v932 = vunpack.c.h.b16 %v373
  %v933 = vunpack.c.l.b16 %v374
  %v934 = vunpack.c.h.b16 %v374
  %v935 = vunpack.c.l.b16 %v375
  %v936 = vunpack.c.h.b16 %v375
  %v937 = vunpack.c.l.b16 %v376
  %v938 = vunpack.c.h.b16 %v376
  %v939 = vunpack.c.l.b16 %v377
  %v940 = vunpack.c.h.b16 %v377
  %v941 = vunpack.c.l.b16 %v378
  %v942 = vunpack.c.h.b16 %v378
  %v943 = vunpack.c.l.b16 %v379
  %v944 = vunpack.c.h.b16 %v379
  %v945 = vunpack.c.l.b16 %v380
  %v946 = vunpack.c.h.b16 %v380
  %v947 = vunpack.c.l.b16 %v381
  %v948 = vunpack.c.h.b16 %v381
  %v949 = vunpack.c.l.b16 %v382
  %v950 = vunpack.c.h.b16 %v382
  %v951 = vunpack.c.l.b16 %v383
  %v952 = vunpack.c.h.b16 %v383
  %v953 = vunpack.c.l.b16 %v384
  %v954 = vunpack.c.h.b16 %v384
  %v955 = vunpack.c.l.b16 %v385
  %v956 = vunpack.c.h.b16 %v385
  %v957 = vunpack.c.l.b16 %v386
  %v958 = vunpack.c.h.b16 %v386
  %v959 = vunpack.c.l.b16 %v387
  %v960 = vunpack.c.h.b16 %v387
  %v961 = vunpack.c.l.b16 %v388
  %v962 = vunpack.c.h.b16 %v388
  %v963 = vunpack.c.l.b16 %v389
  %v964 = vunpack.c.h.b16 %v389
  %v965 = vunpack.c.l.b16 %v390
  %v966 = vunpack.c.h.b16 %v390
  %v967 = vunpack.c.l.b16 %v391
  %v968 = vunpack.c.h.b16 %v391
  %v969 = vunpack.c.l.b16 %v392
  %v970 = vunpack.c.h.b16 %v392
  %v971 = vunpack.c.l.b16 %v393
  %v972 = vunpack.c.h.b16 %v393
  %v973 = vunpack.c.l.b16 %v394
  %v974 = vunpack.c.h.b16 %v394
  %v975 = vunpack.c.l.b16 %v395
  %v976 = vunpack.c.h.b16 %v395
  %v977 = vunpack.c.l.b16 %v396
  %v978 = vunpack.c.h.b16 %v396
  %v979 = vunpack.c.l.b16 %v397
  %v980 = vunpack.c.h.b16 %v397
  %v981 = vunpack.c.l.b16 %v398
  %v982 = vunpack.c.h.b16 %v398
  %v983 = vunpack.c.l.b16 %v399
  %v984 = vunpack.c.h.b16 %v399
  %v985 = vunpack.c.l.b16 %v400
  %v986 = vunpack.c.h.b16 %v400
  %v987 = vunpack.c.l.b16 %v401
  %v988 = vunpack.c.h.b16 %v401
  %v989 = vunpack.c.l.b16 %v402
  %v990 = vunpack.c.h.b16 %v402
  %v991 = vunpack.c.l.b16 %v403
  %v992 = vunpack.c.h.b16 %v403
  %v993 = vunpack.c.l.b16 %v404
  %v994 = vunpack.c.h.b16 %v404
  %v995 = vunpack.c.l.b16 %v405
  %v996 = vunpack.c.h.b16 %v405
  %v997 = vunpack.c.l.b16 %v406
  %v998 = vunpack.c.h.b16 %v406
  %v999 = vunpack.c.l.b16 %v407
  %v1000 = vunpack.c.h.b16 %v407
  %v1001 = vunpack.c.l.b16 %v408
  %v1002 = vunpack.c.h.b16 %v408
  %v1003 = vunpack.c.l.b16 %v409
  %v1004 = vunpack.c.h.b16 %v409
  %v1005 = vunpack.c.l.b16 %v410
  %v1006 = vunpack.c.h.b16 %v410
  %v1007 = vunpack.c.l.b16 %v411
  %v1008 = vunpack.c.h.b16 %v411
  %v1009 = vunpack.c.l.b16 %v412
  %v1010 = vunpack.c.h.b16 %v412
  %v1011 = vunpack.c.l.b16 %v413
  %v1012 = vunpack.c.h.b16 %v413
  %v1013 = vunpack.c.l.b16 %v414
  %v1014 = vunpack.c.h.b16 %v414
  %v1015 = vunpack.c.l.b16 %v415
  %v1016 = vunpack.c.h.b16 %v415
  %v1017 = vunpack.c.l.b16 %v416
  %v1018 = vunpack.c.h.b16 %v416
  %v1019 = vunpack.c.l.b16 %v417
  %v1020 = vunpack.c.h.b16 %v417
  %v1021 = vunpack.c.l.b16 %v418
  %v1022 = vunpack.c.h.b16 %v418
  %v1023 = vunpack.c.l.b16 %v419
  %v1024 = vunpack.c.h.b16 %v419
  %v1025 = vunpack.c.l.b16 %v420
  %v1026 = vunpack.c.h.b16 %v420
  %v1027 = vunpack.c.l.b16 %v421
  %v1028 = vunpack.c.h.b16 %v421
  %v1029 = vunpack.c.l.b16 %v422
  %v1030 = vunpack.c.h.b16 %v422
  %v1031 = vunpack.c.l.b16 %v423
  %v1032 = vunpack.c.h.b16 %v423
  %v1033 = vunpack.c.l.b16 %v424
  %v1034 = vunpack.c.h.b16 %v424
  %v1035 = vunpack.c.l.b16 %v425
  %v1036 = vunpack.c.h.b16 %v425
  %v1037 = vunpack.c.l.b16 %v426
  %v1038 = vunpack.c.h.b16 %v426
  %v1039 = vunpack.c.l.b16 %v427
  %v1040 = vunpack.c.h.b16 %v427
  %v1041 = vunpack.c.l.b16 %v428
  %v1042 = vunpack.c.h.b16 %v428
  %v1043 = vunpack.c.l.b16 %v429
  %v1044 = vunpack.c.h.b16 %v429
  %v1045 = vunpack.c.l.b16 %v430
  %v1046 = vunpack.c.h.b16 %v430
  %v1047 = vunpack.c.l.b16 %v431
  %v1048 = vunpack.c.h.b16 %v431
  %v1049 = vunpack.c.l.b16 %v432
  %v1050 = vunpack.c.h.b16 %v432
  %v1051 = vunpack.c.l.b16 %v433
  %v1052 = vunpack.c.h.b16 %v433
  %v1053 = vunpack.c.l.b16 %v434
  %v1054 = vunpack.c.h.b16 %v434
  %v1055 = vunpack.c.l.b16 %v435
  %v1056 = vunpack.c.h.b16 %v435
  %v1057 = vunpack.c.l.b16 %v436
  %v1058 = vunpack.c.h.b16 %v436
  %v1059 = vunpack.c.l.b16 %v437
  %v1060 = vunpack.c.h.b16 %v437
  %v1061 = vunpack.c.l.b16 %v438
  %v1062 = vunpack.c.h.b16 %v438
  %v1063 = vunpack.c.l.b16 %v439
  %v1064 = vunpack.c.h.b16 %v439
  %v1065 = vunpack.c.l.b16 %v440
  %v1066 = vunpack.c.h.b16 %v440
  %v1067 = vunpack.c.l.b16 %v441
  %v1068 = vunpack.c.h.b16 %v441
  %v1069 = vunpack.c.l.b16 %v442
  %v1070 = vunpack.c.h.b16 %v442
  %v1071 = vunpack.c.l.b16 %v443
  %v1072 = vunpack.c.h.b16 %v443
  %v1073 = vunpack.c.l.b16 %v444
  %v1074 = vunpack.c.h.b16 %v444
  %v1075 = vunpack.c.l.b16 %v445
  %v1076 = vunpack.c.h.b16 %v445
  %v1077 = vunpack.c.l.b16 %v446
  %v1078 = vunpack.c.h.b16 %v446
  %v1079 = vunpack.c.l.b16 %v447
  %v1080 = vunpack.c.h.b16 %v447
  %v1081 = vunpack.c.l.b16 %v448
  %v1082 = vunpack.c.h.b16 %v448
  %v1083 = vunpack.c.l.b16 %v449
  %v1084 = vunpack.c.h.b16 %v449
  %v1085 = vunpack.c.l.b16 %v450
  %v1086 = vunpack.c.h.b16 %v450
  %v1087 = vunpack.c.l.b16 %v451
  %v1088 = vunpack.c.h.b16 %v451
  %v1089 = vunpack.c.l.b16 %v452
  %v1090 = vunpack.c.h.b16 %v452
  %v1091 = vunpack.c.l.b16 %v453
  %v1092 = vunpack.c.h.b16 %v453
  %v1093 = vunpack.c.l.b16 %v454
  %v1094 = vunpack.c.h.b16 %v454
  %v1095 = vunpack.c.l.b16 %v455
  %v1096 = vunpack.c.h.b16 %v455
  %v1097 = vunpack.c.l.b16 %v456
  %v1098 = vunpack.c.h.b16 %v456
  %v1099 = vunpack.c.l.b16 %v457
  %v1100 = vunpack.c.h.b16 %v457
  %v1101 = vunpack.c.l.b16 %v458
  %v1102 = vunpack.c.h.b16 %v458
  %v1103 = vunpack.c.l.b16 %v459
  %v1104 = vunpack.c.h.b16 %v459
  %v1105 = vunpack.c.l.b16 %v460
  %v1106 = vunpack.c.h.b16 %v460
  %v1107 = vunpack.c.l.b16 %v461
  %v1108 = vunpack.c.h.b16 %v461
  %v1109 = vunpack.c.l.b16 %v462
  %v1110 = vunpack.c.h.b16 %v462
  %v1111 = vunpack.c.l.b16 %v463
  %v1112 = vunpack.c.h.b16 %v463
  %v1113 = vunpack.c.l.b16 %v464
  %v1114 = vunpack.c.h.b16 %v464
  %v1115 = vunpack.c.l.b16 %v465
  %v1116 = vunpack.c.h.b16 %v465
  %v1117 = vunpack.c.l.b16 %v466
  %v1118 = vunpack.c.h.b16 %v466
  %v1119 = vunpack.c.l.b16 %v467
  %v1120 = vunpack.c.h.b16 %v467
  %v1121 = vunpack.c.l.b16 %v468
  %v1122 = vunpack.c.h.b16 %v468
  %v1123 = vunpack.c.l.b16 %v469
  %v1124 = vunpack.c.h.b16 %v469
  %v1125 = vunpack.c.l.b16 %v470
  %v1126 = vunpack.c.h.b16 %v470
  %v1127 = vunpack.c.l.b16 %v471
  %v1128 = vunpack.c.h.b16 %v471
  %v1129 = vunpack.c.l.b16 %v472
  %v1130 = vunpack.c.h.b16 %v472
  %v1131 = vpack.c.b16 %v751, %v747
  %v1132 = vpack.c.b16 %v752, %v748
  %v1133 = vpack.c.b16 %v753, %v749
  %v1134 = vpack.c.b16 %v754, %v750
  %v1135 = vpack.c.b16 %v759, %v755
  %v1136 = vpack.c.b16 %v760, %v756
  %v1137 = vpack.c.b16 %v761, %v757
  %v1138 = vpack.c.b16 %v762, %v758
  %v1139 = vpack.c.b16 %v767, %v763
  %v1140 = vpack.c.b16 %v768, %v764
  %v1141 = vpack.c.b16 %v769, %v765
  %v1142 = vpack.c.b16 %v770, %v766
  %v1143 = vpack.c.b16 %v775, %v771
  %v1144 = vpack.c.b16 %v776, %v772
  %v1145 = vpack.c.b16 %v777, %v773
  %v1146 = vpack.c.b16 %v778, %v774
  %v1147 = vpack.c.b16 %v783, %v779
  %v1148 = vpack.c.b16 %v784, %v780
  %v1149 = vpack.c.b16 %v785, %v781
  %v1150 = vpack.c.b16 %v786, %v782
  %v1151 = vpack.c.b16 %v791, %v787
  %v1152 = vpack.c.b16 %v792, %v788
  %v1153 = vpack.c.b16 %v793, %v789
  %v1154 = vpack.c.b16 %v794, %v790
  %v1155 = vpack.c.b16 %v799, %v795
  %v1156 = vpack.c.b16 %v800, %v796
  %v1157 = vpack.c.b16 %v801, %v797
  %v1158 = vpack.c.b16 %v802, %v798
  %v1159 = vpack.c.b16 %v807, %v803
  %v1160 = vpack.c.b16 %v808, %v804
  %v1161 = vpack.c.b16 %v809, %v805
  %v1162 = vpack.c.b16 %v810, %v806
  %v1163 = vpack.c.b16 %v815, %v811
  %v1164 = vpack.c.b16 %v816, %v812
  %v1165 = vpack.c.b16 %v817, %v813
  %v1166 = vpack.c.b16 %v818, %v814
  %v1167 = vpack.c.b16 %v823, %v819
  %v1168 = vpack.c.b16 %v824, %v820
  %v1169 = vpack.c.b16 %v825, %v821
  %v1170 = vpack.c.b16 %v826, %v822
  %v1171 = vpack.c.b16 %v831, %v827
  %v1172 = vpack.c.b16 %v832, %v828
  %v1173 = vpack.c.b16 %v833, %v829
  %v1174 = vpack.c.b16 %v834, %v830
  %v1175 = vpack.c.b16 %v839, %v835
  %v1176 = vpack.c.b16 %v840, %v836
  %v1177 = vpack.c.b16 %v841, %v837
  %v1178 = vpack.c.b16 %v842, %v838
  %v1179 = vpack.c.b16 %v847, %v843
  %v1180 = vpack.c.b16 %v848, %v844
  %v1181 = vpack.c.b16 %v849, %v845
  %v1182 = vpack.c.b16 %v850, %v846
  %v1183 = vpack.c.b16 %v855, %v851
  %v1184 = vpack.c.b16 %v856, %v852
  %v1185 = vpack.c.b16 %v857, %v853
  %v1186 = vpack.c.b16 %v858, %v854
  %v1187 = vpack.c.b16 %v863, %v859
  %v1188 = vpack.c.b16 %v864, %v860
  %v1189 = vpack.c.b16 %v865, %v861
  %v1190 = vpack.c.b16 %v866, %v862
  %v1191 = vpack.c.b16 %v871, %v867
  %v1192 = vpack.c.b16 %v872, %v868
  %v1193 = vpack.c.b16 %v873, %v869
  %v1194 = vpack.c.b16 %v874, %v870
  %v1195 = vpack.c.b16 %v879, %v875
  %v1196 = vpack.c.b16 %v880, %v876
  %v1197 = vpack.c.b16 %v881, %v877
  %v1198 = vpack.c.b16 %v882, %v878
  %v1199 = vpack.c.b16 %v887, %v883
  %v1200 = vpack.c.b16 %v888, %v884
  %v1201 = vpack.c.b16 %v889, %v885
  %v1202 = vpack.c.b16 %v890, %v886
  %v1203 = vpack.c.b16 %v895, %v891
  %v1204 = vpack.c.b16 %v896, %v892
  %v1205 = vpack.c.b16 %v897, %v893
  %v1206 = vpack.c.b16 %v898, %v894
  %v1207 = vpack.c.b16 %v903, %v899
  %v1208 = vpack.c.b16 %v904, %v900
  %v1209 = vpack.c.b16 %v905, %v901
  %v1210 = vpack.c.b16 %v906, %v902
  %v1211 = vpack.c.b16 %v911, %v907
  %v1212 = vpack.c.b16 %v912, %v908
  %v1213 = vpack.c.b16 %v913, %v909
  %v1214 = vpack.c.b16 %v914, %v910
  %v1215 = vpack.c.b16 %v919, %v915
  %v1216 = vpack.c.b16 %v920, %v916
  %v1217 = vpack.c.b16 %v921, %v917
  %v1218 = vpack.c.b16 %v922, %v918
  %v1219 = vpack.c.b16 %v927, %v923
  %v1220 = vpack.c.b16 %v928, %v924
  %v1221 = vpack.c.b16 %v929, %v925
  %v1222 = vpack.c.b16 %v930, %v926
  %v1223 = vpack.c.b16 %v935, %v931
  %v1224 = vpack.c.b16 %v936, %v932
  %v1225 = vpack.c.b16 %v937, %v933
  %v1226 = vpack.c.b16 %v938, %v934
  %v1227 = vpack.c.b16 %v943, %v939
  %v1228 = vpack.c.b16 %v944, %v940
  %v1229 = vpack.c.b16 %v945, %v941
  %v1230 = vpack.c.b16 %v946, %v942
  %v1231 = vpack.c.b16 %v951, %v947
  %v1232 = vpack.c.b16 %v952, %v948
  %v1233 = vpack.c.b16 %v953, %v949
  %v1234 = vpack.c.b16 %v954, %v950
  %v1235 = vpack.c.b16 %v959, %v955
  %v1236 = vpack.c.b16 %v960, %v956
  %v1237 = vpack.c.b16 %v961, %v957
  %v1238 = vpack.c.b16 %v962, %v958
  %v1239 = vpack.c.b16 %v967, %v963
  %v1240 = vpack.c.b16 %v968, %v964
  %v1241 = vpack.c.b16 %v969, %v965
  %v1242 = vpack.c.b16 %v970, %v966
  %v1243 = vpack.c.b16 %v975, %v971
  %v1244 = vpack.c.b16 %v976, %v972
  %v1245 = vpack.c.b16 %v977, %v973
  %v1246 = vpack.c.b16 %v978, %v974
  %v1247 = vpack.c.b16 %v983, %v979
  %v1248 = vpack.c.b16 %v984, %v980
  %v1249 = vpack.c.b16 %v985, %v981
  %v1250 = vpack.c.b16 %v986, %v982
  %v1251 = vpack.c.b16 %v991, %v987
  %v1252 = vpack.c.b16 %v992, %v988
  %v1253 = vpack.c.b16 %v993, %v989
  %v1254 = vpack.c.b16 %v994, %v990
  %v1255 = vpack.c.b16 %v999, %v995
  %v1256 = vpack.c.b16 %v1000, %v996
  %v1257 = vpack.c.b16 %v1001, %v997
  %v1258 = vpack.c.b16 %v1002, %v998
  %v1259 = vpack.c.b16 %v1007, %v1003
  %v1260 = vpack.c.b16 %v1008, %v1004
  %v1261 = vpack.c.b16 %v1009, %v1005
  %v1262 = vpack.c.b16 %v1010, %v1006
  %v1263 = vpack.c.b16 %v1015, %v1011
  %v1264 = vpack.c.b16 %v1016, %v1012
  %v1265 = vpack.c.b16 %v1017, %v1013
  %v1266 = vpack.c.b16 %v1018, %v1014
  %v1267 = vpack.c.b16 %v1023, %v1019
  %v1268 = vpack.c.b16 %v1024, %v1020
  %v1269 = vpack.c.b16 %v1025, %v1021
  %v1270 = vpack.c.b16 %v1026, %v1022
  %v1271 = vpack.c.b16 %v1031, %v1027
  %v1272 = vpack.c.b16 %v1032, %v1028
  %v1273 = vpack.c.b16 %v1033, %v1029
  %v1274 = vpack.c.b16 %v1034, %v1030
  %v1275 = vpack.c.b16 %v1039, %v1035
  %v1276 = vpack.c.b16 %v1040, %v1036
  %v1277 = vpack.c.b16 %v1041, %v1037
  %v1278 = vpack.c.b16 %v1042, %v1038
  %v1279 = vpack.c.b16 %v1047, %v1043
  %v1280 = vpack.c.b16 %v1048, %v1044
  %v1281 = vpack.c.b16 %v1049, %v1045
  %v1282 = vpack.c.b16 %v1050, %v1046
  %v1283 = vpack.c.b16 %v1055, %v1051
  %v1284 = vpack.c.b16 %v1056, %v1052
  %v1285 = vpack.c.b16 %v1057, %v1053
  %v1286 = vpack.c.b16 %v1058, %v1054
  %v1287 = vpack.c.b16 %v1063, %v1059
  %v1288 = vpack.c.b16 %v1064, %v1060
  %v1289 = vpack.c.b16 %v1065, %v1061
  %v1290 = vpack.c.b16 %v1066, %v1062
  %v1291 = vpack.c.b16 %v1071, %v1067
  %v1292 = vpack.c.b16 %v1072, %v1068
  %v1293 = vpack.c.b16 %v1073, %v1069
  %v1294 = vpack.c.b16 %v1074, %v1070
  %v1295 = vpack.c.b16 %v1079, %v1075
  %v1296 = vpack.c.b16 %v1080, %v1076
  %v1297 = vpack.c.b16 %v1081, %v1077
  %v1298 = vpack.c.b16 %v1082, %v1078
  %v1299 = vpack.c.b16 %v1087, %v1083
  %v1300 = vpack.c.b16 %v1088, %v1084
  %v1301 = vpack.c.b16 %v1089, %v1085
  %v1302 = vpack.c.b16 %v1090, %v1086
  %v1303 = vpack.c.b16 %v1095, %v1091
  %v1304 = vpack.c.b16 %v1096, %v1092
  %v1305 = vpack.c.b16 %v1097, %v1093
  %v1306 = vpack.c.b16 %v1098, %v1094
  %v1307 = vpack.c.b16 %v1103, %v1099
  %v1308 = vpack.c.b16 %v1104, %v1100
  %v1309 = vpack.c.b16 %v1105, %v1101
  %v1310 = vpack.c.b16 %v1106, %v1102
  %v1311 = vpack.c.b16 %v1111, %v1107
  %v1312 = vpack.c.b16 %v1112, %v1108
  %v1313 = vpack.c.b16 %v1113, %v1109
  %v1314 = vpack.c.b16 %v1114, %v1110
  %v1315 = vpack.c.b16 %v1119, %v1115
  %v1316 = vpack.c.b16 %v1120, %v1116
  %v1317 = vpack.c.b16 %v1121, %v1117
  %v1318 = vpack.c.b16 %v1122, %v1118
  %v1319 = vpack.c.b16 %v1127, %v1123
  %v1320 = vpack.c.b16 %v1128, %v1124
  %v1321 = vpack.c.b16 %v1129, %v1125
  %v1322 = vpack.c.b16 %v1130, %v1126
  %1515 = vmatprep.subr.bf16.mxu0 %v1160
  %1516 = vmatpush1.bf16.msra.mxu0 %v1159
  %1517 = vmatprep.subr.bf16.mxu0 %v1156
  %1518 = vmatpush1.bf16.msra.mxu0 %v1155
  %1519 = vmatprep.subr.bf16.mxu0 %v1152
  %1520 = vmatpush1.bf16.msra.mxu0 %v1151
  %1521 = vmatprep.subr.bf16.mxu0 %v1148
  %1522 = vmatpush1.bf16.msra.mxu0 %v1147
  %1523 = vmatprep.subr.bf16.mxu0 %v1144
  %1524 = vmatpush1.bf16.msra.mxu0 %v1143
  %1525 = vmatprep.subr.bf16.mxu0 %v1140
  %1526 = vmatpush1.bf16.msra.mxu0 %v1139
  %1527 = vmatprep.subr.bf16.mxu0 %v1136
  %1528 = vmatpush1.bf16.msra.mxu0 %v1135
  %1529 = vmatprep.subr.bf16.mxu0 %v1132
  %1530 = vmatpush1.bf16.msra.mxu0 %v1131
  %1531 = vmatprep.subr.bf16.mxu0 %v1192
  %1532 = vmatpush2.bf16.msra.mxu0 %v1191
  %1533 = vmatprep.subr.bf16.mxu0 %v1188
  %1534 = vmatpush2.bf16.msra.mxu0 %v1187
  %1535 = vmatprep.subr.bf16.mxu0 %v1184
  %1536 = vmatpush2.bf16.msra.mxu0 %v1183
  %1537 = vmatprep.subr.bf16.mxu0 %v1180
  %1538 = vmatpush2.bf16.msra.mxu0 %v1179
  %1539 = vmatprep.subr.bf16.mxu0 %v1176
  %1540 = vmatpush2.bf16.msra.mxu0 %v1175
  %1541 = vmatprep.subr.bf16.mxu0 %v1172
  %1542 = vmatpush2.bf16.msra.mxu0 %v1171
  %1543 = vmatprep.subr.bf16.mxu0 %v1168
  %1544 = vmatpush2.bf16.msra.mxu0 %v1167
  %1545 = vmatprep.subr.bf16.mxu0 %v1164
  %1546 = vmatpush2.bf16.msra.mxu0 %v1163
  %1547 = vmatprep.mubr.bf16.mxu0 %v532
  %1548 = vmatmul.mubr.bf16.gmra.mxu0 %v531
  %v1549 = vpop.f32.mrf.mxu0
  %v1550 = vadd.f32 %v478, %v1549
  %v1551 = vpop.f32.mrf.mxu0
  %v1552 = vadd.f32 %v482, %v1551
  %v1553 = vpop.f32.mrf.mxu0
  %v1554 = vadd.f32 %v478, %v1553
  %v1555 = vpop.f32.mrf.mxu0
  %v1556 = vadd.f32 %v482, %v1555
  %1557 = vmatprep.mubr.bf16.mxu0 %v538
  %1558 = vmatmul.mubr.bf16.gmra.mxu0 %v537
  %v1559 = vpop.f32.mrf.mxu0
  %v1560 = vadd.f32 %v478, %v1559
  %v1561 = vpop.f32.mrf.mxu0
  %v1562 = vadd.f32 %v482, %v1561
  %v1563 = vpop.f32.mrf.mxu0
  %v1564 = vadd.f32 %v478, %v1563
  %v1565 = vpop.f32.mrf.mxu0
  %v1566 = vadd.f32 %v482, %v1565
  %1567 = vdwg.mxu0
  %1568 = vmatprep.subr.bf16.mxu0 %v1224
  %1569 = vmatpush1.bf16.msra.mxu0 %v1223
  %1570 = vmatprep.subr.bf16.mxu0 %v1220
  %1571 = vmatpush1.bf16.msra.mxu0 %v1219
  %1572 = vmatprep.subr.bf16.mxu0 %v1216
  %1573 = vmatpush1.bf16.msra.mxu0 %v1215
  %1574 = vmatprep.subr.bf16.mxu0 %v1212
  %1575 = vmatpush1.bf16.msra.mxu0 %v1211
  %1576 = vmatprep.subr.bf16.mxu0 %v1208
  %1577 = vmatpush1.bf16.msra.mxu0 %v1207
  %1578 = vmatprep.subr.bf16.mxu0 %v1204
  %1579 = vmatpush1.bf16.msra.mxu0 %v1203
  %1580 = vmatprep.subr.bf16.mxu0 %v1200
  %1581 = vmatpush1.bf16.msra.mxu0 %v1199
  %1582 = vmatprep.subr.bf16.mxu0 %v1196
  %1583 = vmatpush1.bf16.msra.mxu0 %v1195
  %1584 = vmatprep.subr.bf16.mxu0 %v1256
  %1585 = vmatpush2.bf16.msra.mxu0 %v1255
  %1586 = vmatprep.subr.bf16.mxu0 %v1252
  %1587 = vmatpush2.bf16.msra.mxu0 %v1251
  %1588 = vmatprep.subr.bf16.mxu0 %v1248
  %1589 = vmatpush2.bf16.msra.mxu0 %v1247
  %1590 = vmatprep.subr.bf16.mxu0 %v1244
  %1591 = vmatpush2.bf16.msra.mxu0 %v1243
  %1592 = vmatprep.subr.bf16.mxu0 %v1240
  %1593 = vmatpush2.bf16.msra.mxu0 %v1239
  %1594 = vmatprep.subr.bf16.mxu0 %v1236
  %1595 = vmatpush2.bf16.msra.mxu0 %v1235
  %1596 = vmatprep.subr.bf16.mxu0 %v1232
  %1597 = vmatpush2.bf16.msra.mxu0 %v1231
  %1598 = vmatprep.subr.bf16.mxu0 %v1228
  %1599 = vmatpush2.bf16.msra.mxu0 %v1227
  %1600 = vmatprep.mubr.bf16.mxu0 %v534
  %1601 = vmatmul.mubr.bf16.gmra.mxu0 %v533
  %v1602 = vpop.f32.mrf.mxu0
  %v1603 = vadd.f32 %v1550, %v1602
  %v1604 = vpop.f32.mrf.mxu0
  %v1605 = vadd.f32 %v1552, %v1604
  %v1606 = vpop.f32.mrf.mxu0
  %v1607 = vadd.f32 %v1554, %v1606
  %v1608 = vpop.f32.mrf.mxu0
  %v1609 = vadd.f32 %v1556, %v1608
  %1610 = vmatprep.mubr.bf16.mxu0 %v540
  %1611 = vmatmul.mubr.bf16.gmra.mxu0 %v539
  %v1612 = vpop.f32.mrf.mxu0
  %v1613 = vadd.f32 %v1560, %v1612
  %v1614 = vpop.f32.mrf.mxu0
  %v1615 = vadd.f32 %v1562, %v1614
  %v1616 = vpop.f32.mrf.mxu0
  %v1617 = vadd.f32 %v1564, %v1616
  %v1618 = vpop.f32.mrf.mxu0
  %v1619 = vadd.f32 %v1566, %v1618
  %1620 = vdwg.mxu0
  %1621 = vmatprep.subr.bf16.mxu0 %v1288
  %1622 = vmatpush1.bf16.msra.mxu0 %v1287
  %1623 = vmatprep.subr.bf16.mxu0 %v1284
  %1624 = vmatpush1.bf16.msra.mxu0 %v1283
  %1625 = vmatprep.subr.bf16.mxu0 %v1280
  %1626 = vmatpush1.bf16.msra.mxu0 %v1279
  %1627 = vmatprep.subr.bf16.mxu0 %v1276
  %1628 = vmatpush1.bf16.msra.mxu0 %v1275
  %1629 = vmatprep.subr.bf16.mxu0 %v1272
  %1630 = vmatpush1.bf16.msra.mxu0 %v1271
  %1631 = vmatprep.subr.bf16.mxu0 %v1268
  %1632 = vmatpush1.bf16.msra.mxu0 %v1267
  %1633 = vmatprep.subr.bf16.mxu0 %v1264
  %1634 = vmatpush1.bf16.msra.mxu0 %v1263
  %1635 = vmatprep.subr.bf16.mxu0 %v1260
  %1636 = vmatpush1.bf16.msra.mxu0 %v1259
  %1637 = vmatprep.subr.bf16.mxu0 %v1320
  %1638 = vmatpush2.bf16.msra.mxu0 %v1319
  %1639 = vmatprep.subr.bf16.mxu0 %v1316
  %1640 = vmatpush2.bf16.msra.mxu0 %v1315
  %1641 = vmatprep.subr.bf16.mxu0 %v1312
  %1642 = vmatpush2.bf16.msra.mxu0 %v1311
  %1643 = vmatprep.subr.bf16.mxu0 %v1308
  %1644 = vmatpush2.bf16.msra.mxu0 %v1307
  %1645 = vmatprep.subr.bf16.mxu0 %v1304
  %1646 = vmatpush2.bf16.msra.mxu0 %v1303
  %1647 = vmatprep.subr.bf16.mxu0 %v1300
  %1648 = vmatpush2.bf16.msra.mxu0 %v1299
  %1649 = vmatprep.subr.bf16.mxu0 %v1296
  %1650 = vmatpush2.bf16.msra.mxu0 %v1295
  %1651 = vmatprep.subr.bf16.mxu0 %v1292
  %1652 = vmatpush2.bf16.msra.mxu0 %v1291
  %1653 = vmatprep.mubr.bf16.mxu0 %v536
  %1654 = vmatmul.mubr.bf16.gmra.mxu0 %v535
  %v1655 = vpop.f32.mrf.mxu0
  %v1656 = vadd.f32 %v1603, %v1655
  %v1657 = vpop.f32.mrf.mxu0
  %v1658 = vadd.f32 %v1605, %v1657
  %v1659 = vpop.f32.mrf.mxu0
  %v1660 = vadd.f32 %v1607, %v1659
  %v1661 = vpop.f32.mrf.mxu0
  %v1662 = vadd.f32 %v1609, %v1661
  %1663 = vmatprep.mubr.bf16.mxu0 %v542
  %1664 = vmatmul.mubr.bf16.gmra.mxu0 %v541
  %v1665 = vpop.f32.mrf.mxu0
  %v1666 = vadd.f32 %v1613, %v1665
  %v1667 = vpop.f32.mrf.mxu0
  %v1668 = vadd.f32 %v1615, %v1667
  %v1669 = vpop.f32.mrf.mxu0
  %v1670 = vadd.f32 %v1617, %v1669
  %v1671 = vpop.f32.mrf.mxu0
  %v1672 = vadd.f32 %v1619, %v1671
  %1673 = vdwg.mxu0
  %1674 = vmatprep.subr.bf16.mxu0 %v1162
  %1675 = vmatpush1.bf16.msra.mxu0 %v1161
  %1676 = vmatprep.subr.bf16.mxu0 %v1158
  %1677 = vmatpush1.bf16.msra.mxu0 %v1157
  %1678 = vmatprep.subr.bf16.mxu0 %v1154
  %1679 = vmatpush1.bf16.msra.mxu0 %v1153
  %1680 = vmatprep.subr.bf16.mxu0 %v1150
  %1681 = vmatpush1.bf16.msra.mxu0 %v1149
  %1682 = vmatprep.subr.bf16.mxu0 %v1146
  %1683 = vmatpush1.bf16.msra.mxu0 %v1145
  %1684 = vmatprep.subr.bf16.mxu0 %v1142
  %1685 = vmatpush1.bf16.msra.mxu0 %v1141
  %1686 = vmatprep.subr.bf16.mxu0 %v1138
  %1687 = vmatpush1.bf16.msra.mxu0 %v1137
  %1688 = vmatprep.subr.bf16.mxu0 %v1134
  %1689 = vmatpush1.bf16.msra.mxu0 %v1133
  %1690 = vmatprep.subr.bf16.mxu0 %v1194
  %1691 = vmatpush2.bf16.msra.mxu0 %v1193
  %1692 = vmatprep.subr.bf16.mxu0 %v1190
  %1693 = vmatpush2.bf16.msra.mxu0 %v1189
  %1694 = vmatprep.subr.bf16.mxu0 %v1186
  %1695 = vmatpush2.bf16.msra.mxu0 %v1185
  %1696 = vmatprep.subr.bf16.mxu0 %v1182
  %1697 = vmatpush2.bf16.msra.mxu0 %v1181
  %1698 = vmatprep.subr.bf16.mxu0 %v1178
  %1699 = vmatpush2.bf16.msra.mxu0 %v1177
  %1700 = vmatprep.subr.bf16.mxu0 %v1174
  %1701 = vmatpush2.bf16.msra.mxu0 %v1173
  %1702 = vmatprep.subr.bf16.mxu0 %v1170
  %1703 = vmatpush2.bf16.msra.mxu0 %v1169
  %1704 = vmatprep.subr.bf16.mxu0 %v1166
  %1705 = vmatpush2.bf16.msra.mxu0 %v1165
  %1706 = vmatprep.mubr.bf16.mxu0 %v532
  %1707 = vmatmul.mubr.bf16.gmra.mxu0 %v531
  %v1708 = vpop.f32.mrf.mxu0
  %v1709 = vadd.f32 %v486, %v1708
  %v1710 = vpop.f32.mrf.mxu0
  %v1711 = vadd.f32 %v490, %v1710
  %v1712 = vpop.f32.mrf.mxu0
  %v1713 = vadd.f32 %v486, %v1712
  %v1714 = vpop.f32.mrf.mxu0
  %v1715 = vadd.f32 %v490, %v1714
  %1716 = vmatprep.mubr.bf16.mxu0 %v538
  %1717 = vmatmul.mubr.bf16.gmra.mxu0 %v537
  %v1718 = vpop.f32.mrf.mxu0
  %v1719 = vadd.f32 %v486, %v1718
  %v1720 = vpop.f32.mrf.mxu0
  %v1721 = vadd.f32 %v490, %v1720
  %v1722 = vpop.f32.mrf.mxu0
  %v1723 = vadd.f32 %v486, %v1722
  %v1724 = vpop.f32.mrf.mxu0
  %v1725 = vadd.f32 %v490, %v1724
  %1726 = vdwg.mxu0
  %1727 = vmatprep.subr.bf16.mxu0 %v1226
  %1728 = vmatpush1.bf16.msra.mxu0 %v1225
  %1729 = vmatprep.subr.bf16.mxu0 %v1222
  %1730 = vmatpush1.bf16.msra.mxu0 %v1221
  %1731 = vmatprep.subr.bf16.mxu0 %v1218
  %1732 = vmatpush1.bf16.msra.mxu0 %v1217
  %1733 = vmatprep.subr.bf16.mxu0 %v1214
  %1734 = vmatpush1.bf16.msra.mxu0 %v1213
  %1735 = vmatprep.subr.bf16.mxu0 %v1210
  %1736 = vmatpush1.bf16.msra.mxu0 %v1209
  %1737 = vmatprep.subr.bf16.mxu0 %v1206
  %1738 = vmatpush1.bf16.msra.mxu0 %v1205
  %1739 = vmatprep.subr.bf16.mxu0 %v1202
  %1740 = vmatpush1.bf16.msra.mxu0 %v1201
  %1741 = vmatprep.subr.bf16.mxu0 %v1198
  %1742 = vmatpush1.bf16.msra.mxu0 %v1197
  %1743 = vmatprep.subr.bf16.mxu0 %v1258
  %1744 = vmatpush2.bf16.msra.mxu0 %v1257
  %1745 = vmatprep.subr.bf16.mxu0 %v1254
  %1746 = vmatpush2.bf16.msra.mxu0 %v1253
  %1747 = vmatprep.subr.bf16.mxu0 %v1250
  %1748 = vmatpush2.bf16.msra.mxu0 %v1249
  %1749 = vmatprep.subr.bf16.mxu0 %v1246
  %1750 = vmatpush2.bf16.msra.mxu0 %v1245
  %1751 = vmatprep.subr.bf16.mxu0 %v1242
  %1752 = vmatpush2.bf16.msra.mxu0 %v1241
  %1753 = vmatprep.subr.bf16.mxu0 %v1238
  %1754 = vmatpush2.bf16.msra.mxu0 %v1237
  %1755 = vmatprep.subr.bf16.mxu0 %v1234
  %1756 = vmatpush2.bf16.msra.mxu0 %v1233
  %1757 = vmatprep.subr.bf16.mxu0 %v1230
  %1758 = vmatpush2.bf16.msra.mxu0 %v1229
  %1759 = vmatprep.mubr.bf16.mxu0 %v534
  %1760 = vmatmul.mubr.bf16.gmra.mxu0 %v533
  %v1761 = vpop.f32.mrf.mxu0
  %v1762 = vadd.f32 %v1709, %v1761
  %v1763 = vpop.f32.mrf.mxu0
  %v1764 = vadd.f32 %v1711, %v1763
  %v1765 = vpop.f32.mrf.mxu0
  %v1766 = vadd.f32 %v1713, %v1765
  %v1767 = vpop.f32.mrf.mxu0
  %v1768 = vadd.f32 %v1715, %v1767
  %1769 = vmatprep.mubr.bf16.mxu0 %v540
  %1770 = vmatmul.mubr.bf16.gmra.mxu0 %v539
  %v1771 = vpop.f32.mrf.mxu0
  %v1772 = vadd.f32 %v1719, %v1771
  %v1773 = vpop.f32.mrf.mxu0
  %v1774 = vadd.f32 %v1721, %v1773
  %v1775 = vpop.f32.mrf.mxu0
  %v1776 = vadd.f32 %v1723, %v1775
  %v1777 = vpop.f32.mrf.mxu0
  %v1778 = vadd.f32 %v1725, %v1777
  %1779 = vdwg.mxu0
  %1780 = vmatprep.subr.bf16.mxu0 %v1290
  %1781 = vmatpush1.bf16.msra.mxu0 %v1289
  %1782 = vmatprep.subr.bf16.mxu0 %v1286
  %1783 = vmatpush1.bf16.msra.mxu0 %v1285
  %1784 = vmatprep.subr.bf16.mxu0 %v1282
  %1785 = vmatpush1.bf16.msra.mxu0 %v1281
  %1786 = vmatprep.subr.bf16.mxu0 %v1278
  %1787 = vmatpush1.bf16.msra.mxu0 %v1277
  %1788 = vmatprep.subr.bf16.mxu0 %v1274
  %1789 = vmatpush1.bf16.msra.mxu0 %v1273
  %1790 = vmatprep.subr.bf16.mxu0 %v1270
  %1791 = vmatpush1.bf16.msra.mxu0 %v1269
  %1792 = vmatprep.subr.bf16.mxu0 %v1266
  %1793 = vmatpush1.bf16.msra.mxu0 %v1265
  %1794 = vmatprep.subr.bf16.mxu0 %v1262
  %1795 = vmatpush1.bf16.msra.mxu0 %v1261
  %1796 = vmatprep.subr.bf16.mxu0 %v1322
  %1797 = vmatpush2.bf16.msra.mxu0 %v1321
  %1798 = vmatprep.subr.bf16.mxu0 %v1318
  %1799 = vmatpush2.bf16.msra.mxu0 %v1317
  %1800 = vmatprep.subr.bf16.mxu0 %v1314
  %1801 = vmatpush2.bf16.msra.mxu0 %v1313
  %1802 = vmatprep.subr.bf16.mxu0 %v1310
  %1803 = vmatpush2.bf16.msra.mxu0 %v1309
  %1804 = vmatprep.subr.bf16.mxu0 %v1306
  %1805 = vmatpush2.bf16.msra.mxu0 %v1305
  %1806 = vmatprep.subr.bf16.mxu0 %v1302
  %1807 = vmatpush2.bf16.msra.mxu0 %v1301
  %1808 = vmatprep.subr.bf16.mxu0 %v1298
  %1809 = vmatpush2.bf16.msra.mxu0 %v1297
  %1810 = vmatprep.subr.bf16.mxu0 %v1294
  %1811 = vmatpush2.bf16.msra.mxu0 %v1293
  %1812 = vmatprep.mubr.bf16.mxu0 %v536
  %1813 = vmatmul.mubr.bf16.gmra.mxu0 %v535
  %v1814 = vpop.f32.mrf.mxu0
  %v1815 = vadd.f32 %v1762, %v1814
  %v1816 = vpop.f32.mrf.mxu0
  %v1817 = vadd.f32 %v1764, %v1816
  %v1818 = vpop.f32.mrf.mxu0
  %v1819 = vadd.f32 %v1766, %v1818
  %v1820 = vpop.f32.mrf.mxu0
  %v1821 = vadd.f32 %v1768, %v1820
  %1822 = vmatprep.mubr.bf16.mxu0 %v542
  %1823 = vmatmul.mubr.bf16.gmra.mxu0 %v541
  %v1824 = vpop.f32.mrf.mxu0
  %v1825 = vadd.f32 %v1772, %v1824
  %v1826 = vpop.f32.mrf.mxu0
  %v1827 = vadd.f32 %v1774, %v1826
  %v1828 = vpop.f32.mrf.mxu0
  %v1829 = vadd.f32 %v1776, %v1828
  %v1830 = vpop.f32.mrf.mxu0
  %v1831 = vadd.f32 %v1778, %v1830
  %1832 = vdwg.mxu0
  %v1833 = vmul.f32 %v1656, 0.5
  %v1834 = vmul.f32 %v1658, 0.5
  %v1835 = vmul.f32 %v1815, 0.5
  %v1836 = vmul.f32 %v1817, 0.5
  %v1837 = vmul.f32 %v1660, 0.5
  %v1838 = vmul.f32 %v1662, 0.5
  %v1839 = vmul.f32 %v1819, 0.5
  %v1840 = vmul.f32 %v1821, 0.5
  %v1841 = vmul.f32 %v1666, 0.5
  %v1842 = vmul.f32 %v1668, 0.5
  %v1843 = vmul.f32 %v1825, 0.5
  %v1844 = vmul.f32 %v1827, 0.5
  %v1845 = vmul.f32 %v1670, 0.5
  %v1846 = vmul.f32 %v1672, 0.5
  %v1847 = vmul.f32 %v1829, 0.5
  %v1848 = vmul.f32 %v1831, 0.5
  %v1849 = vtanh.pop %v1833
  %v1850 = vtanh.pop %v1834
  %v1851 = vtanh.pop %v1835
  %v1852 = vtanh.pop %v1836
  %v1853 = vtanh.pop %v1837
  %v1854 = vtanh.pop %v1838
  %v1855 = vtanh.pop %v1839
  %v1856 = vtanh.pop %v1840
  %v1857 = vtanh.pop %v1841
  %v1858 = vtanh.pop %v1842
  %v1859 = vtanh.pop %v1843
  %v1860 = vtanh.pop %v1844
  %v1861 = vtanh.pop %v1845
  %v1862 = vtanh.pop %v1846
  %v1863 = vtanh.pop %v1847
  %v1864 = vtanh.pop %v1848
  %v1865 = vadd.f32 %v1849, 1.0
  %v1866 = vadd.f32 %v1853, 1.0
  %v1867 = vadd.f32 %v1857, 1.0
  %v1868 = vadd.f32 %v1861, 1.0
  %v1869 = vmul.f32 %v1865, 0.5
  %v1870 = vmul.f32 %v1866, 0.5
  %v1871 = vmul.f32 %v1867, 0.5
  %v1872 = vmul.f32 %v1868, 0.5
  %v1873 = vadd.f32 %v1850, 1.0
  %v1874 = vadd.f32 %v1854, 1.0
  %v1875 = vadd.f32 %v1858, 1.0
  %v1876 = vadd.f32 %v1862, 1.0
  %v1877 = vmul.f32 %v1873, 0.5
  %v1878 = vmul.f32 %v1874, 0.5
  %v1879 = vmul.f32 %v1875, 0.5
  %v1880 = vmul.f32 %v1876, 0.5
  %v1881 = vadd.f32 %v1851, 1.0
  %v1882 = vadd.f32 %v1855, 1.0
  %v1883 = vadd.f32 %v1859, 1.0
  %v1884 = vadd.f32 %v1863, 1.0
  %v1885 = vmul.f32 %v1881, 0.5
  %v1886 = vmul.f32 %v1882, 0.5
  %v1887 = vmul.f32 %v1883, 0.5
  %v1888 = vmul.f32 %v1884, 0.5
  %v1889 = vld [vmem:[%s2] sm:$0xff]
  %v1890 = vld [vmem:[%s2 + $0x8] sm:$0xff]
  %v1891 = vld [vmem:[%s2 + $0x10] sm:$0xff]
  %v1892 = vld [vmem:[%s2 + $0x18] sm:$0xff]
  %v1893 = vmul.f32 %v1877, %v1889
  %v1894 = vmul.f32 %v1878, %v1890
  %v1895 = vmul.f32 %v1879, %v1891
  %v1896 = vmul.f32 %v1880, %v1892
  %v1897 = vmul.f32 %v1869, %v1852
  %v1898 = vmul.f32 %v1870, %v1856
  %v1899 = vmul.f32 %v1871, %v1860
  %v1900 = vmul.f32 %v1872, %v1864
  %v1901 = vadd.f32 %v1893, %v1897
  %v1902 = vadd.f32 %v1894, %v1898
  %v1903 = vadd.f32 %v1895, %v1899
  %v1904 = vadd.f32 %v1896, %v1900
  %v1905 = vtanh.pop %v1901
  %v1906 = vtanh.pop %v1902
  %v1907 = vtanh.pop %v1903
  %v1908 = vtanh.pop %v1904
  %v1909 = vmul.f32 %v1885, %v1905
  %v1910 = vmul.f32 %v1886, %v1906
  %v1911 = vmul.f32 %v1887, %v1907
  %v1912 = vmul.f32 %v1888, %v1908
  %1913 = vst [vmem:[%s6] sm:$0xff] %v1901
  %1914 = vst [vmem:[%s6 + $0x8] sm:$0xff] %v1902
  %1915 = vst [vmem:[%s6 + $0x10] sm:$0xff] %v1903
  %1916 = vst [vmem:[%s6 + $0x18] sm:$0xff] %v1904
  %1917 = vst [vmem:[%s5] sm:$0xff] %v1909
  %1918 = vst [vmem:[%s5 + $0x8] sm:$0xff] %v1910
  %1919 = vst [vmem:[%s5 + $0x10] sm:$0xff] %v1911
  %1920 = vst [vmem:[%s5 + $0x18] sm:$0xff] %v1912
  // Predicated region
  $region22: #{convlstm_cell.1} parent=0 // pred_check
    _
  $region23: #{convlstm_cell.1} parent=0 // pred_check_branch
    %1922 = sbr.rel (0) target = $region25
  $region24: #{convlstm_cell.1} parent=0 // pred_region
    _
  $region25: #{convlstm_cell.1} parent=0 // pred_fallthru
    _
  // Predicated region
  $region26: #{convlstm_cell.1} parent=0 // pred_check
    _
  $region27: #{convlstm_cell.1} parent=0 // pred_check_branch
    %1924 = sbr.rel (0) target = $region29
  $region28: #{convlstm_cell.1} parent=0 // pred_region
    _
  $region29: #{convlstm_cell.1} parent=0 // pred_fallthru
    _
  // Predicated region
  $region30: #{convlstm_cell.1} parent=0 // pred_check
    _
  $region31: #{convlstm_cell.1} parent=0 // pred_check_branch
    %1926 = sbr.rel (0) target = $region33
  $region32: #{convlstm_cell.1} parent=0 // pred_region
    _
  $region33: #{convlstm_cell.1} parent=0 // pred_fallthru
    _
  // Predicated region
  $region34: #{convlstm_cell.1} parent=0 // pred_check
    _
  $region35: #{convlstm_cell.1} parent=0 // pred_check_branch
    %1928 = sbr.rel (0) target = $region37
  $region36: #{convlstm_cell.1} parent=0 // pred_region
    _
  $region37: #{convlstm_cell.1} parent=0 // pred_fallthru
    _

</llo_original>
